<compile_context>
chip_gen: v5e
topology: v5e:2x2
jax: 0.10.0
libtpu: 0.0.40
codegen_flags: <defaults>
</compile_context>

<pallas_src>
import math
from functools import partial

import jax
import jax.numpy as jnp
from jax import lax
from jax.experimental import pallas as pl
from jax.experimental.pallas import tpu as pltpu

_UNROLL_S_MAX = 16   # below this, fully unroll the recurrence and keep the
                     # hoisted gate pre-activations in vregs (no scratch trip)


def _lstm_cell(pre, c, H):
    """One LSTM cell update from fused pre-activations (gate order i, f, g, o)."""
    i_g = jax.nn.sigmoid(pre[:, 0:H])
    f_g = jax.nn.sigmoid(pre[:, H:2 * H])
    g_g = jnp.tanh(pre[:, 2 * H:3 * H])
    o_g = jax.nn.sigmoid(pre[:, 3 * H:4 * H])
    c_new = f_g * c + i_g * g_g
    h_new = o_g * jnp.tanh(c_new)
    return h_new, c_new


def _lstm_stack_kernel(*args, num_layers, seq_len, hidden, mxu_dtype, small_s):
    """Fused multi-layer LSTM over one batch tile.

    args = (x_ref,
            wx_0, wh_0, b_0, ..., wx_{L-1}, wh_{L-1}, b_{L-1},
            h0_ref, c0_ref,                      # (L, Bt, H)
            y_ref, hn_ref, cn_ref,               # (S, Bt, H), (L, Bt, H) x2
            [xg_scr],                            # (S, Bt, 4H) f32   (large S)
            [y_scr])                             # (S, Bt, H)        (L > 1)
    """
    n_w = 3 * num_layers
    x_ref = args[0]
    w_refs = args[1:1 + n_w]
    h0_ref, c0_ref = args[1 + n_w], args[2 + n_w]
    y_ref, hn_ref, cn_ref = args[3 + n_w], args[4 + n_w], args[5 + n_w]
    scratch = list(args[6 + n_w:])
    xg_scr = None if small_s else scratch.pop(0)
    y_scr = scratch.pop(0) if num_layers > 1 else None

    S, H = seq_len, hidden
    f32 = jnp.float32
    Bt = x_ref.shape[1]

    for layer in range(num_layers):
        wx = w_refs[3 * layer][...]           # (IN_l, 4H)  mxu_dtype
        wh = w_refs[3 * layer + 1][...]       # (H, 4H)     mxu_dtype
        b = w_refs[3 * layer + 2][...]        # (1, 4H)     f32

        if layer == 0:
            inp = x_ref[...].astype(mxu_dtype)            # (S, Bt, IN0)
        else:
            inp = y_scr[...].astype(mxu_dtype)            # (S, Bt, H)
        in_dim = inp.shape[-1]

        # Hoisted input projection for all timesteps: one lane-dense MXU
        # matmul (bf16 operands, f32 accumulation), bias fused in.
        xg = jnp.dot(inp.reshape(S * Bt, in_dim), wx,
                     preferred_element_type=f32)
        xg = (xg + b).reshape(S, Bt, 4 * H)               # (S, Bt, 4H) f32
        if not small_s:
            xg_scr[...] = xg

        h = h0_ref[layer].astype(f32)                     # (Bt, H) f32 state
        c = c0_ref[layer].astype(f32)
        last = layer == num_layers - 1

        if small_s:
            # Fully-unrolled recurrence; per step only h @ Wh + elementwise.
            # The last layer streams straight into y_ref (no y_scr round trip).
            for t in range(S):
                pre = xg[t] + jnp.dot(h.astype(mxu_dtype), wh,
                                      preferred_element_type=f32)
                h, c = _lstm_cell(pre, c, H)
                if last:
                    y_ref[t] = h.astype(y_ref.dtype)
                else:
                    y_scr[t] = h.astype(y_scr.dtype)
        else:
            def step(t, carry, wh=wh, last=last):
                h, c = carry
                pre = xg_scr[t] + jnp.dot(h.astype(mxu_dtype), wh,
                                          preferred_element_type=f32)
                h_new, c_new = _lstm_cell(pre, c, H)
                if last:
                    y_ref[t] = h_new.astype(y_ref.dtype)
                else:
                    y_scr[t] = h_new.astype(y_scr.dtype)
                return (h_new, c_new)

            h, c = lax.fori_loop(0, S, step, (h, c))

        hn_ref[layer] = h.astype(hn_ref.dtype)
        cn_ref[layer] = c.astype(cn_ref.dtype)


def _ceil_to(x, m):
    return -(-x // m) * m


def _padded_bytes(shape, dtype):
    """VMEM footprint estimate including (8, 128) sublane/lane padding."""
    s = list(shape)
    s[-1] = _ceil_to(s[-1], 128)
    if len(s) >= 2:
        s[-2] = _ceil_to(s[-2], 8)
    n = 1
    for d in s:
        n *= d
    return n * jnp.dtype(dtype).itemsize


def lstm_stack_pallas(x, params, h0, c0, *, block_batch=128,
                      mxu_dtype=jnp.bfloat16):
    """Multi-layer LSTM, one fused pallas_call, parallel grid over batch tiles.

    x: (S, B, IN); params: [(wx (IN_l,4H), wh (H,4H), b (1,4H)), ...] in f32;
    h0, c0: (L, B, H).  Returns (y (S,B,H), h_n (L,B,H), c_n (L,B,H)).
    """
    S, B, IN = x.shape
    L = len(params)
    H = params[0][1].shape[0]
    dt = x.dtype

    # Batch tiling: tile is a multiple of 8 sublanes; pad B up to a multiple
    # of the tile so the (parallel) grid divides evenly.
    Bt = min(_ceil_to(B, 8), max(8, (block_batch // 8) * 8))
    Bp = _ceil_to(_ceil_to(B, 8), Bt)
    nb = Bp // Bt
    if Bp != B:
        pad = [(0, 0), (0, Bp - B), (0, 0)]
        x = jnp.pad(x, pad)
        h0 = jnp.pad(h0, pad)
        c0 = jnp.pad(c0, pad)

    small_s = S <= _UNROLL_S_MAX
    scr_dtype = jnp.bfloat16 if mxu_dtype == jnp.bfloat16 else jnp.float32

    flat_w = []
    in_specs = [pl.BlockSpec((S, Bt, IN), lambda i: (0, i, 0))]
    for (wx, wh, b) in params:
        wx = wx.astype(mxu_dtype)             # halve weight DMA/VMEM footprint
        wh = wh.astype(mxu_dtype)
        b = b.astype(jnp.float32)             # bias added to the f32 accumulator
        flat_w += [wx, wh, b]
        in_specs += [
            pl.BlockSpec(wx.shape, lambda i: (0, 0)),   # resident across grid
            pl.BlockSpec(wh.shape, lambda i: (0, 0)),
            pl.BlockSpec(b.shape, lambda i: (0, 0)),
        ]
    in_specs += [
        pl.BlockSpec((L, Bt, H), lambda i: (0, i, 0)),
        pl.BlockSpec((L, Bt, H), lambda i: (0, i, 0)),
    ]
    out_specs = [
        pl.BlockSpec((S, Bt, H), lambda i: (0, i, 0)),
        pl.BlockSpec((L, Bt, H), lambda i: (0, i, 0)),
        pl.BlockSpec((L, Bt, H), lambda i: (0, i, 0)),
    ]
    out_shape = (
        jax.ShapeDtypeStruct((S, Bp, H), dt),
        jax.ShapeDtypeStruct((L, Bp, H), dt),
        jax.ShapeDtypeStruct((L, Bp, H), dt),
    )

    scratch_shapes = []
    if not small_s:
        scratch_shapes.append(pltpu.VMEM((S, Bt, 4 * H), jnp.float32))
    if L > 1:
        scratch_shapes.append(pltpu.VMEM((S, Bt, H), scr_dtype))

    # Explicit VMEM budget (default scoped limit is only 16-32 MiB).
    need = 2 * _padded_bytes((S, Bt, IN), dt)
    need += sum(2 * _padded_bytes(w.shape, w.dtype) for w in flat_w)
    need += 4 * _padded_bytes((L, Bt, H), h0.dtype)          # h0, c0
    need += 2 * _padded_bytes((S, Bt, H), dt)                # y
    need += 4 * _padded_bytes((L, Bt, H), dt)                # hn, cn
    if not small_s:
        need += _padded_bytes((S, Bt, 4 * H), jnp.float32)
    if L > 1:
        need += _padded_bytes((S, Bt, H), scr_dtype)
    vmem_limit = int(min(100 * 2 ** 20,
                         max(32 * 2 ** 20, int(need * 1.5) + (2 << 20))))

    kernel = partial(_lstm_stack_kernel, num_layers=L, seq_len=S, hidden=H,
                     mxu_dtype=mxu_dtype, small_s=small_s)

    grid_spec = pltpu.PrefetchScalarGridSpec(
        num_scalar_prefetch=0,
        grid=(nb,),
        in_specs=in_specs,
        out_specs=out_specs,
        scratch_shapes=scratch_shapes,
    )

    y, hn, cn = pl.pallas_call(
        kernel,
        out_shape=out_shape,
        grid_spec=grid_spec,
        compiler_params=pltpu.CompilerParams(
            dimension_semantics=("parallel",),   # independent batch tiles
            vmem_limit_bytes=vmem_limit,
        ),
    )(x, *flat_w, h0, c0)

    if Bp != B:
        y, hn, cn = y[:, :B], hn[:, :B], cn[:, :B]
    return y, hn, cn


def _init_lstm_params(key, in0, hidden, num_layers):
    """PyTorch nn.LSTM-style uniform(-k, k) init, fused-gate layout (i,f,g,o)."""
    k = 1.0 / math.sqrt(hidden)
    params = []
    for layer in range(num_layers):
        in_dim = in0 if layer == 0 else hidden
        key, k1, k2, k3, k4 = jax.random.split(key, 5)
        wx = jax.random.uniform(k1, (in_dim, 4 * hidden), jnp.float32, -k, k)
        wh = jax.random.uniform(k2, (hidden, 4 * hidden), jnp.float32, -k, k)
        b_ih = jax.random.uniform(k3, (1, 4 * hidden), jnp.float32, -k, k)
        b_hh = jax.random.uniform(k4, (1, 4 * hidden), jnp.float32, -k, k)
        params.append((wx, wh, b_ih + b_hh))
    return params, key


class BaseRNNPallas:
    """JAX/Pallas port of BaseRNN's rnn_forward (multi-layer LSTM)."""

    def __init__(self, model_parameters, latent_size, batch_size, key):
        self.hidden_size = model_parameters['hidden_size']
        self.number_of_hidden_layers = model_parameters['hidden_layers']
        self.action_size = model_parameters['action_size']
        self.latent_size = latent_size
        self.loss_scale_option = model_parameters['loss_scale_option']
        self.reward_output_activation_function_type = \
            model_parameters['reward_output_activation_function']
        if self.reward_output_activation_function_type == 'sigmoid':
            self.reward_output_activation_function = jax.nn.sigmoid
            self.denormalize_reward = lambda x: x
        elif self.reward_output_activation_function_type == 'tanh':
            self.reward_output_activation_function = jnp.tanh
            self.denormalize_reward = lambda x: (x + 1.0) / 2.0
        else:
            raise RuntimeError('unknown reward activation')
        self.batch_size = batch_size

        self.params, _ = _init_lstm_params(
            key, self.latent_size + self.action_size, self.hidden_size,
            self.number_of_hidden_layers)

        self.initialize_hidden()

    def initialize_hidden(self):
        shape = (self.number_of_hidden_layers, self.batch_size,
                 self.hidden_size)
        self.hidden = (jnp.zeros(shape, jnp.float32),
                       jnp.zeros(shape, jnp.float32))
        return self.hidden

    def rnn_forward(self, latents, actions):
        # glue: concat in plain JAX; the whole LSTM stack in one Pallas kernel.
        x = jnp.concatenate([latents, actions], axis=-1)  # (S, B, IN)
        h0, c0 = self.hidden
        y, h_n, c_n = lstm_stack_pallas(x, self.params, h0, c0)
        self.hidden = (h_n, c_n)
        return y, self.hidden

    def combine_latent_and_reward_loss(self, latent_loss, reward_loss):
        if self.loss_scale_option is None:
            return latent_loss + reward_loss
        elif self.loss_scale_option == 'multiplication':
            return latent_loss + reward_loss * self.latent_size
        elif self.loss_scale_option == 'division':
            return (latent_loss + reward_loss) / (self.latent_size + 1)
        raise RuntimeError('unknown loss scale option')

    # TODO(synk): predict / forward / loss_function are abstract in BaseRNN
    # (implemented by subclasses), so only the shared rnn_forward path is
    # implemented here.


def _lstm_reference(x, params, h0_all, c0_all):
    """Pure-jnp reference (fused-gate layout, PyTorch i,f,g,o order)."""
    H = params[0][1].shape[0]
    layer_in = x
    hs, cs = [], []
    for layer, (wx, wh, b) in enumerate(params):
        h = h0_all[layer]
        c = c0_all[layer]
        ys = []
        for t in range(x.shape[0]):
            pre = layer_in[t] @ wx + h @ wh + b
            i_g = jax.nn.sigmoid(pre[:, 0:H])
            f_g = jax.nn.sigmoid(pre[:, H:2 * H])
            g_g = jnp.tanh(pre[:, 2 * H:3 * H])
            o_g = jax.nn.sigmoid(pre[:, 3 * H:4 * H])
            c = f_g * c + i_g * g_g
            h = o_g * jnp.tanh(c)
            ys.append(h)
        layer_in = jnp.stack(ys, axis=0)
        hs.append(h)
        cs.append(c)
    return layer_in, jnp.stack(hs, axis=0), jnp.stack(cs, axis=0)


if __name__ == "__main__":
    model_parameters = dict(
        hidden_size=32,
        hidden_layers=2,
        action_size=8,
        loss_scale_option='division',
        reduce_action_coordinate_space_by=None,
        action_transformation_function=None,
        reward_output_activation_function='sigmoid',
    )
    latent_size = 24
    batch_size = 4
    seq_len = 8

    key = jax.random.PRNGKey(0)
    key, k_model, k_lat, k_act = jax.random.split(key, 4)

    model = BaseRNNPallas(model_parameters, latent_size, batch_size, k_model)

    latents = jax.random.normal(k_lat, (seq_len, batch_size, latent_size),
                                jnp.float32)
    actions = jax.random.normal(k_act, (seq_len, batch_size,
                                        model_parameters['action_size']),
                                jnp.float32)

    H = model_parameters['hidden_size']
    L = model_parameters['hidden_layers']

    # --- module forward (default bf16-MXU / f32-state path) ----------------
    outputs, (h_n, c_n) = model.rnn_forward(latents, actions)
    outputs = jax.block_until_ready(outputs)
    h_n = jax.block_until_ready(h_n)
    c_n = jax.block_until_ready(c_n)

    x = jnp.concatenate([latents, actions], axis=-1)
    zeros = jnp.zeros((L, batch_size, H), jnp.float32)
    ref_y, ref_h, ref_c = _lstm_reference(x, model.params, zeros, zeros)

    assert outputs.shape == (seq_len, batch_size, H)
    assert h_n.shape == zeros.shape and c_n.shape == zeros.shape
    assert jnp.allclose(outputs, ref_y, atol=5e-2, rtol=5e-2)
    assert jnp.allclose(h_n, ref_h, atol=5e-2, rtol=5e-2)
    assert jnp.allclose(c_n, ref_c, atol=5e-2, rtol=5e-2)

    # --- strict f32 structural check (same kernel, f32 MXU operands) -------
    y32, h32, c32 = lstm_stack_pallas(x, model.params, zeros, zeros,
                                      mxu_dtype=jnp.float32)
    assert jnp.allclose(y32, ref_y, atol=1e-3, rtol=1e-3)
    assert jnp.allclose(h32, ref_h, atol=1e-3, rtol=1e-3)
    assert jnp.allclose(c32, ref_c, atol=1e-3, rtol=1e-3)

    # --- 1-layer config (exercises the "no inter-layer scratch" path) ------
    p1, key = _init_lstm_params(key, latent_size + 8, H, 1)
    z1 = jnp.zeros((1, batch_size, H), jnp.float32)
    y1, h1, c1 = lstm_stack_pallas(x, p1, z1, z1, mxu_dtype=jnp.float32)
    r1y, r1h, r1c = _lstm_reference(x, p1, z1, z1)
    assert jnp.allclose(y1, r1y, atol=1e-3, rtol=1e-3)
    assert jnp.allclose(h1, r1h, atol=1e-3, rtol=1e-3)
    assert jnp.allclose(c1, r1c, atol=1e-3, rtol=1e-3)

    # --- longer sequence (exercises the fori_loop + xg-scratch path) -------
    S2 = 24
    key, k2a = jax.random.split(key)
    x2 = jax.random.normal(k2a, (S2, batch_size, latent_size + 8), jnp.float32)
    y2, h2, c2 = lstm_stack_pallas(x2, model.params, zeros, zeros,
                                   mxu_dtype=jnp.float32)
    r2y, r2h, r2c = _lstm_reference(x2, model.params, zeros, zeros)
    assert jnp.allclose(y2, r2y, atol=1e-3, rtol=1e-3)
    assert jnp.allclose(c2, r2c, atol=1e-3, rtol=1e-3)

    # --- multi-block batch grid (exercises the parallel-grid path) ---------
    B3 = 20
    key, k3a = jax.random.split(key)
    x3 = jax.random.normal(k3a, (seq_len, B3, latent_size + 8), jnp.float32)
    z3 = jnp.zeros((L, B3, H), jnp.float32)
    y3, h3, c3 = lstm_stack_pallas(x3, model.params, z3, z3,
                                   mxu_dtype=jnp.float32, block_batch=8)
    r3y, r3h, r3c = _lstm_reference(x3, model.params, z3, z3)
    assert jnp.allclose(y3, r3y, atol=1e-3, rtol=1e-3)
    assert jnp.allclose(h3, r3h, atol=1e-3, rtol=1e-3)
    assert jnp.allclose(c3, r3c, atol=1e-3, rtol=1e-3)

    print("KERNEL_OK")
</pallas_src>

<mosaic_0001>
module attributes {stable_mosaic.version = 11 : i64} {
  func.func @_lstm_stack_kernel(%arg0: i32, %arg1: memref<8x8x32xf32, #tpu.memory_space<vmem>>, %arg2: memref<32x128xbf16, #tpu.memory_space<vmem>>, %arg3: memref<32x128xbf16, #tpu.memory_space<vmem>>, %arg4: memref<1x128xf32, #tpu.memory_space<vmem>>, %arg5: memref<32x128xbf16, #tpu.memory_space<vmem>>, %arg6: memref<32x128xbf16, #tpu.memory_space<vmem>>, %arg7: memref<1x128xf32, #tpu.memory_space<vmem>>, %arg8: memref<2x8x32xf32, #tpu.memory_space<vmem>>, %arg9: memref<2x8x32xf32, #tpu.memory_space<vmem>>, %arg10: memref<8x8x32xf32, #tpu.memory_space<vmem>>, %arg11: memref<2x8x32xf32, #tpu.memory_space<vmem>>, %arg12: memref<2x8x32xf32, #tpu.memory_space<vmem>>, %arg13: memref<8x8x32xbf16, #tpu.memory_space<vmem>>) attributes {dimension_semantics = [#tpu.dimension_semantics<parallel>], iteration_bounds = array<i64: 1>, scalar_prefetch = 0 : i64, scratch_operands = 1 : i64, tpu.core_type = #tpu.core_type<tc>, window_params = [{transform_indices = @transform_0, window_bounds = array<i64: 8, 8, 32>}, {pipeline_mode = #tpu.pipeline_mode<synchronous>, transform_indices = @transform_1, window_bounds = array<i64: 32, 128>}, {pipeline_mode = #tpu.pipeline_mode<synchronous>, transform_indices = @transform_2, window_bounds = array<i64: 32, 128>}, {pipeline_mode = #tpu.pipeline_mode<synchronous>, transform_indices = @transform_3, window_bounds = array<i64: 1, 128>}, {pipeline_mode = #tpu.pipeline_mode<synchronous>, transform_indices = @transform_4, window_bounds = array<i64: 32, 128>}, {pipeline_mode = #tpu.pipeline_mode<synchronous>, transform_indices = @transform_5, window_bounds = array<i64: 32, 128>}, {pipeline_mode = #tpu.pipeline_mode<synchronous>, transform_indices = @transform_6, window_bounds = array<i64: 1, 128>}, {transform_indices = @transform_7, window_bounds = array<i64: 2, 8, 32>}, {transform_indices = @transform_8, window_bounds = array<i64: 2, 8, 32>}, {transform_indices = @transform_9, window_bounds = array<i64: 8, 8, 32>}, {transform_indices = @transform_10, window_bounds = array<i64: 2, 8, 32>}, {transform_indices = @transform_11, window_bounds = array<i64: 2, 8, 32>}]} {
    %c0 = arith.constant 0 : index
    %c0_0 = arith.constant 0 : index
    %0 = vector.load %arg2[%c0, %c0_0] : memref<32x128xbf16, #tpu.memory_space<vmem>>, vector<32x128xbf16>
    %c0_1 = arith.constant 0 : index
    %c0_2 = arith.constant 0 : index
    %1 = vector.load %arg3[%c0_1, %c0_2] : memref<32x128xbf16, #tpu.memory_space<vmem>>, vector<32x128xbf16>
    %c0_3 = arith.constant 0 : index
    %c0_4 = arith.constant 0 : index
    %2 = vector.load %arg4[%c0_3, %c0_4] : memref<1x128xf32, #tpu.memory_space<vmem>>, vector<1x128xf32>
    %c0_5 = arith.constant 0 : index
    %c0_6 = arith.constant 0 : index
    %c0_7 = arith.constant 0 : index
    %3 = vector.load %arg1[%c0_5, %c0_6, %c0_7] : memref<8x8x32xf32, #tpu.memory_space<vmem>>, vector<8x8x32xf32>
    %4 = arith.truncf %3 : vector<8x8x32xf32> to vector<8x8x32xbf16>
    %5 = vector.shape_cast %4 : vector<8x8x32xbf16> to vector<64x32xbf16>
    %cst = arith.constant dense<0.000000e+00> : vector<64x128xf32>
    %6 = tpu.matmul %5, %0, %cst {dimension_numbers = #tpu.dot_dimension_numbers<[1], [0], [0], [1], [0, 0, 1, 1], [], []>} : vector<64x32xbf16>, vector<32x128xbf16>, vector<64x128xf32> -> vector<64x128xf32>
    %7 = vector.broadcast %2 : vector<1x128xf32> to vector<64x128xf32>
    %8 = arith.addf %6, %7 : vector<64x128xf32>
    %9 = vector.shape_cast %8 : vector<64x128xf32> to vector<8x8x128xf32>
    %c0_8 = arith.constant 0 : index
    %c0_9 = arith.constant 0 : index
    %c0_10 = arith.constant 0 : index
    %10 = vector.load %arg8[%c0_8, %c0_9, %c0_10] : memref<2x8x32xf32, #tpu.memory_space<vmem>>, vector<1x8x32xf32>
    %11 = vector.shape_cast %10 : vector<1x8x32xf32> to vector<8x32xf32>
    %c0_11 = arith.constant 0 : index
    %c0_12 = arith.constant 0 : index
    %c0_13 = arith.constant 0 : index
    %12 = vector.load %arg9[%c0_11, %c0_12, %c0_13] : memref<2x8x32xf32, #tpu.memory_space<vmem>>, vector<1x8x32xf32>
    %13 = vector.shape_cast %12 : vector<1x8x32xf32> to vector<8x32xf32>
    %14 = vector.extract_strided_slice %9 {offsets = [0, 0, 0], sizes = [1, 8, 128], strides = [1, 1, 1]} : vector<8x8x128xf32> to vector<1x8x128xf32>
    %15 = vector.shape_cast %14 : vector<1x8x128xf32> to vector<8x128xf32>
    %16 = arith.truncf %11 : vector<8x32xf32> to vector<8x32xbf16>
    %cst_14 = arith.constant dense<0.000000e+00> : vector<8x128xf32>
    %17 = tpu.matmul %16, %1, %cst_14 {dimension_numbers = #tpu.dot_dimension_numbers<[1], [0], [0], [1], [0, 0, 1, 1], [], []>} : vector<8x32xbf16>, vector<32x128xbf16>, vector<8x128xf32> -> vector<8x128xf32>
    %18 = arith.addf %15, %17 : vector<8x128xf32>
    %19 = vector.extract_strided_slice %18 {offsets = [0, 0], sizes = [8, 32], strides = [1, 1]} : vector<8x128xf32> to vector<8x32xf32>
    %20 = arith.negf %19 : vector<8x32xf32>
    %21 = math.exp %20 : vector<8x32xf32>
    %cst_15 = arith.constant 1.000000e+00 : f32
    %22 = vector.broadcast %cst_15 : f32 to vector<8x32xf32>
    %23 = arith.addf %22, %21 : vector<8x32xf32>
    %24 = arith.divf %22, %23 : vector<8x32xf32>
    %25 = vector.extract_strided_slice %18 {offsets = [0, 32], sizes = [8, 32], strides = [1, 1]} : vector<8x128xf32> to vector<8x32xf32>
    %26 = arith.negf %25 : vector<8x32xf32>
    %27 = math.exp %26 : vector<8x32xf32>
    %cst_16 = arith.constant 1.000000e+00 : f32
    %28 = vector.broadcast %cst_16 : f32 to vector<8x32xf32>
    %29 = arith.addf %28, %27 : vector<8x32xf32>
    %30 = arith.divf %28, %29 : vector<8x32xf32>
    %31 = vector.extract_strided_slice %18 {offsets = [0, 64], sizes = [8, 32], strides = [1, 1]} : vector<8x128xf32> to vector<8x32xf32>
    %32 = math.tanh %31 : vector<8x32xf32>
    %33 = vector.extract_strided_slice %18 {offsets = [0, 96], sizes = [8, 32], strides = [1, 1]} : vector<8x128xf32> to vector<8x32xf32>
    %34 = arith.negf %33 : vector<8x32xf32>
    %35 = math.exp %34 : vector<8x32xf32>
    %cst_17 = arith.constant 1.000000e+00 : f32
    %36 = vector.broadcast %cst_17 : f32 to vector<8x32xf32>
    %37 = arith.addf %36, %35 : vector<8x32xf32>
    %38 = arith.divf %36, %37 : vector<8x32xf32>
    %39 = arith.mulf %30, %13 : vector<8x32xf32>
    %40 = arith.mulf %24, %32 : vector<8x32xf32>
    %41 = arith.addf %39, %40 : vector<8x32xf32>
    %42 = math.tanh %41 : vector<8x32xf32>
    %43 = arith.mulf %38, %42 : vector<8x32xf32>
    %44 = arith.truncf %43 : vector<8x32xf32> to vector<8x32xbf16>
    %c0_18 = arith.constant 0 : index
    %c0_19 = arith.constant 0 : index
    %c0_20 = arith.constant 0 : index
    %45 = vector.load %arg13[%c0_18, %c0_19, %c0_20] : memref<8x8x32xbf16, #tpu.memory_space<vmem>>, vector<1x8x32xbf16>
    %46 = vector.shape_cast %45 : vector<1x8x32xbf16> to vector<8x32xbf16>
    %47 = vector.shape_cast %44 : vector<8x32xbf16> to vector<1x8x32xbf16>
    tpu.vector_store %arg13[%c0_18, %c0_19, %c0_20], %47 {strides = array<i32>} : memref<8x8x32xbf16, #tpu.memory_space<vmem>>, vector<1x8x32xbf16>,
    %48 = vector.extract_strided_slice %9 {offsets = [1, 0, 0], sizes = [1, 8, 128], strides = [1, 1, 1]} : vector<8x8x128xf32> to vector<1x8x128xf32>
    %49 = vector.shape_cast %48 : vector<1x8x128xf32> to vector<8x128xf32>
    %50 = arith.truncf %43 : vector<8x32xf32> to vector<8x32xbf16>
    %cst_21 = arith.constant dense<0.000000e+00> : vector<8x128xf32>
    %51 = tpu.matmul %50, %1, %cst_21 {dimension_numbers = #tpu.dot_dimension_numbers<[1], [0], [0], [1], [0, 0, 1, 1], [], []>} : vector<8x32xbf16>, vector<32x128xbf16>, vector<8x128xf32> -> vector<8x128xf32>
    %52 = arith.addf %49, %51 : vector<8x128xf32>
    %53 = vector.extract_strided_slice %52 {offsets = [0, 0], sizes = [8, 32], strides = [1, 1]} : vector<8x128xf32> to vector<8x32xf32>
    %54 = arith.negf %53 : vector<8x32xf32>
    %55 = math.exp %54 : vector<8x32xf32>
    %cst_22 = arith.constant 1.000000e+00 : f32
    %56 = vector.broadcast %cst_22 : f32 to vector<8x32xf32>
    %57 = arith.addf %56, %55 : vector<8x32xf32>
    %58 = arith.divf %56, %57 : vector<8x32xf32>
    %59 = vector.extract_strided_slice %52 {offsets = [0, 32], sizes = [8, 32], strides = [1, 1]} : vector<8x128xf32> to vector<8x32xf32>
    %60 = arith.negf %59 : vector<8x32xf32>
    %61 = math.exp %60 : vector<8x32xf32>
    %cst_23 = arith.constant 1.000000e+00 : f32
    %62 = vector.broadcast %cst_23 : f32 to vector<8x32xf32>
    %63 = arith.addf %62, %61 : vector<8x32xf32>
    %64 = arith.divf %62, %63 : vector<8x32xf32>
    %65 = vector.extract_strided_slice %52 {offsets = [0, 64], sizes = [8, 32], strides = [1, 1]} : vector<8x128xf32> to vector<8x32xf32>
    %66 = math.tanh %65 : vector<8x32xf32>
    %67 = vector.extract_strided_slice %52 {offsets = [0, 96], sizes = [8, 32], strides = [1, 1]} : vector<8x128xf32> to vector<8x32xf32>
    %68 = arith.negf %67 : vector<8x32xf32>
    %69 = math.exp %68 : vector<8x32xf32>
    %cst_24 = arith.constant 1.000000e+00 : f32
    %70 = vector.broadcast %cst_24 : f32 to vector<8x32xf32>
    %71 = arith.addf %70, %69 : vector<8x32xf32>
    %72 = arith.divf %70, %71 : vector<8x32xf32>
    %73 = arith.mulf %64, %41 : vector<8x32xf32>
    %74 = arith.mulf %58, %66 : vector<8x32xf32>
    %75 = arith.addf %73, %74 : vector<8x32xf32>
    %76 = math.tanh %75 : vector<8x32xf32>
    %77 = arith.mulf %72, %76 : vector<8x32xf32>
    %78 = arith.truncf %77 : vector<8x32xf32> to vector<8x32xbf16>
    %c1 = arith.constant 1 : index
    %c0_25 = arith.constant 0 : index
    %c0_26 = arith.constant 0 : index
    %79 = vector.load %arg13[%c1, %c0_25, %c0_26] : memref<8x8x32xbf16, #tpu.memory_space<vmem>>, vector<1x8x32xbf16>
    %80 = vector.shape_cast %79 : vector<1x8x32xbf16> to vector<8x32xbf16>
    %81 = vector.shape_cast %78 : vector<8x32xbf16> to vector<1x8x32xbf16>
    tpu.vector_store %arg13[%c1, %c0_25, %c0_26], %81 {strides = array<i32>} : memref<8x8x32xbf16, #tpu.memory_space<vmem>>, vector<1x8x32xbf16>,
    %82 = vector.extract_strided_slice %9 {offsets = [2, 0, 0], sizes = [1, 8, 128], strides = [1, 1, 1]} : vector<8x8x128xf32> to vector<1x8x128xf32>
    %83 = vector.shape_cast %82 : vector<1x8x128xf32> to vector<8x128xf32>
    %84 = arith.truncf %77 : vector<8x32xf32> to vector<8x32xbf16>
    %cst_27 = arith.constant dense<0.000000e+00> : vector<8x128xf32>
    %85 = tpu.matmul %84, %1, %cst_27 {dimension_numbers = #tpu.dot_dimension_numbers<[1], [0], [0], [1], [0, 0, 1, 1], [], []>} : vector<8x32xbf16>, vector<32x128xbf16>, vector<8x128xf32> -> vector<8x128xf32>
    %86 = arith.addf %83, %85 : vector<8x128xf32>
    %87 = vector.extract_strided_slice %86 {offsets = [0, 0], sizes = [8, 32], strides = [1, 1]} : vector<8x128xf32> to vector<8x32xf32>
    %88 = arith.negf %87 : vector<8x32xf32>
    %89 = math.exp %88 : vector<8x32xf32>
    %cst_28 = arith.constant 1.000000e+00 : f32
    %90 = vector.broadcast %cst_28 : f32 to vector<8x32xf32>
    %91 = arith.addf %90, %89 : vector<8x32xf32>
    %92 = arith.divf %90, %91 : vector<8x32xf32>
    %93 = vector.extract_strided_slice %86 {offsets = [0, 32], sizes = [8, 32], strides = [1, 1]} : vector<8x128xf32> to vector<8x32xf32>
    %94 = arith.negf %93 : vector<8x32xf32>
    %95 = math.exp %94 : vector<8x32xf32>
    %cst_29 = arith.constant 1.000000e+00 : f32
    %96 = vector.broadcast %cst_29 : f32 to vector<8x32xf32>
    %97 = arith.addf %96, %95 : vector<8x32xf32>
    %98 = arith.divf %96, %97 : vector<8x32xf32>
    %99 = vector.extract_strided_slice %86 {offsets = [0, 64], sizes = [8, 32], strides = [1, 1]} : vector<8x128xf32> to vector<8x32xf32>
    %100 = math.tanh %99 : vector<8x32xf32>
    %101 = vector.extract_strided_slice %86 {offsets = [0, 96], sizes = [8, 32], strides = [1, 1]} : vector<8x128xf32> to vector<8x32xf32>
    %102 = arith.negf %101 : vector<8x32xf32>
    %103 = math.exp %102 : vector<8x32xf32>
    %cst_30 = arith.constant 1.000000e+00 : f32
    %104 = vector.broadcast %cst_30 : f32 to vector<8x32xf32>
    %105 = arith.addf %104, %103 : vector<8x32xf32>
    %106 = arith.divf %104, %105 : vector<8x32xf32>
    %107 = arith.mulf %98, %75 : vector<8x32xf32>
    %108 = arith.mulf %92, %100 : vector<8x32xf32>
    %109 = arith.addf %107, %108 : vector<8x32xf32>
    %110 = math.tanh %109 : vector<8x32xf32>
    %111 = arith.mulf %106, %110 : vector<8x32xf32>
    %112 = arith.truncf %111 : vector<8x32xf32> to vector<8x32xbf16>
    %c2 = arith.constant 2 : index
    %c0_31 = arith.constant 0 : index
    %c0_32 = arith.constant 0 : index
    %113 = vector.load %arg13[%c2, %c0_31, %c0_32] : memref<8x8x32xbf16, #tpu.memory_space<vmem>>, vector<1x8x32xbf16>
    %114 = vector.shape_cast %113 : vector<1x8x32xbf16> to vector<8x32xbf16>
    %115 = vector.shape_cast %112 : vector<8x32xbf16> to vector<1x8x32xbf16>
    tpu.vector_store %arg13[%c2, %c0_31, %c0_32], %115 {strides = array<i32>} : memref<8x8x32xbf16, #tpu.memory_space<vmem>>, vector<1x8x32xbf16>,
    %116 = vector.extract_strided_slice %9 {offsets = [3, 0, 0], sizes = [1, 8, 128], strides = [1, 1, 1]} : vector<8x8x128xf32> to vector<1x8x128xf32>
    %117 = vector.shape_cast %116 : vector<1x8x128xf32> to vector<8x128xf32>
    %118 = arith.truncf %111 : vector<8x32xf32> to vector<8x32xbf16>
    %cst_33 = arith.constant dense<0.000000e+00> : vector<8x128xf32>
    %119 = tpu.matmul %118, %1, %cst_33 {dimension_numbers = #tpu.dot_dimension_numbers<[1], [0], [0], [1], [0, 0, 1, 1], [], []>} : vector<8x32xbf16>, vector<32x128xbf16>, vector<8x128xf32> -> vector<8x128xf32>
    %120 = arith.addf %117, %119 : vector<8x128xf32>
    %121 = vector.extract_strided_slice %120 {offsets = [0, 0], sizes = [8, 32], strides = [1, 1]} : vector<8x128xf32> to vector<8x32xf32>
    %122 = arith.negf %121 : vector<8x32xf32>
    %123 = math.exp %122 : vector<8x32xf32>
    %cst_34 = arith.constant 1.000000e+00 : f32
    %124 = vector.broadcast %cst_34 : f32 to vector<8x32xf32>
    %125 = arith.addf %124, %123 : vector<8x32xf32>
    %126 = arith.divf %124, %125 : vector<8x32xf32>
    %127 = vector.extract_strided_slice %120 {offsets = [0, 32], sizes = [8, 32], strides = [1, 1]} : vector<8x128xf32> to vector<8x32xf32>
    %128 = arith.negf %127 : vector<8x32xf32>
    %129 = math.exp %128 : vector<8x32xf32>
    %cst_35 = arith.constant 1.000000e+00 : f32
    %130 = vector.broadcast %cst_35 : f32 to vector<8x32xf32>
    %131 = arith.addf %130, %129 : vector<8x32xf32>
    %132 = arith.divf %130, %131 : vector<8x32xf32>
    %133 = vector.extract_strided_slice %120 {offsets = [0, 64], sizes = [8, 32], strides = [1, 1]} : vector<8x128xf32> to vector<8x32xf32>
    %134 = math.tanh %133 : vector<8x32xf32>
    %135 = vector.extract_strided_slice %120 {offsets = [0, 96], sizes = [8, 32], strides = [1, 1]} : vector<8x128xf32> to vector<8x32xf32>
    %136 = arith.negf %135 : vector<8x32xf32>
    %137 = math.exp %136 : vector<8x32xf32>
    %cst_36 = arith.constant 1.000000e+00 : f32
    %138 = vector.broadcast %cst_36 : f32 to vector<8x32xf32>
    %139 = arith.addf %138, %137 : vector<8x32xf32>
    %140 = arith.divf %138, %139 : vector<8x32xf32>
    %141 = arith.mulf %132, %109 : vector<8x32xf32>
    %142 = arith.mulf %126, %134 : vector<8x32xf32>
    %143 = arith.addf %141, %142 : vector<8x32xf32>
    %144 = math.tanh %143 : vector<8x32xf32>
    %145 = arith.mulf %140, %144 : vector<8x32xf32>
    %146 = arith.truncf %145 : vector<8x32xf32> to vector<8x32xbf16>
    %c3 = arith.constant 3 : index
    %c0_37 = arith.constant 0 : index
    %c0_38 = arith.constant 0 : index
    %147 = vector.load %arg13[%c3, %c0_37, %c0_38] : memref<8x8x32xbf16, #tpu.memory_space<vmem>>, vector<1x8x32xbf16>
    %148 = vector.shape_cast %147 : vector<1x8x32xbf16> to vector<8x32xbf16>
    %149 = vector.shape_cast %146 : vector<8x32xbf16> to vector<1x8x32xbf16>
    tpu.vector_store %arg13[%c3, %c0_37, %c0_38], %149 {strides = array<i32>} : memref<8x8x32xbf16, #tpu.memory_space<vmem>>, vector<1x8x32xbf16>,
    %150 = vector.extract_strided_slice %9 {offsets = [4, 0, 0], sizes = [1, 8, 128], strides = [1, 1, 1]} : vector<8x8x128xf32> to vector<1x8x128xf32>
    %151 = vector.shape_cast %150 : vector<1x8x128xf32> to vector<8x128xf32>
    %152 = arith.truncf %145 : vector<8x32xf32> to vector<8x32xbf16>
    %cst_39 = arith.constant dense<0.000000e+00> : vector<8x128xf32>
    %153 = tpu.matmul %152, %1, %cst_39 {dimension_numbers = #tpu.dot_dimension_numbers<[1], [0], [0], [1], [0, 0, 1, 1], [], []>} : vector<8x32xbf16>, vector<32x128xbf16>, vector<8x128xf32> -> vector<8x128xf32>
    %154 = arith.addf %151, %153 : vector<8x128xf32>
    %155 = vector.extract_strided_slice %154 {offsets = [0, 0], sizes = [8, 32], strides = [1, 1]} : vector<8x128xf32> to vector<8x32xf32>
    %156 = arith.negf %155 : vector<8x32xf32>
    %157 = math.exp %156 : vector<8x32xf32>
    %cst_40 = arith.constant 1.000000e+00 : f32
    %158 = vector.broadcast %cst_40 : f32 to vector<8x32xf32>
    %159 = arith.addf %158, %157 : vector<8x32xf32>
    %160 = arith.divf %158, %159 : vector<8x32xf32>
    %161 = vector.extract_strided_slice %154 {offsets = [0, 32], sizes = [8, 32], strides = [1, 1]} : vector<8x128xf32> to vector<8x32xf32>
    %162 = arith.negf %161 : vector<8x32xf32>
    %163 = math.exp %162 : vector<8x32xf32>
    %cst_41 = arith.constant 1.000000e+00 : f32
    %164 = vector.broadcast %cst_41 : f32 to vector<8x32xf32>
    %165 = arith.addf %164, %163 : vector<8x32xf32>
    %166 = arith.divf %164, %165 : vector<8x32xf32>
    %167 = vector.extract_strided_slice %154 {offsets = [0, 64], sizes = [8, 32], strides = [1, 1]} : vector<8x128xf32> to vector<8x32xf32>
    %168 = math.tanh %167 : vector<8x32xf32>
    %169 = vector.extract_strided_slice %154 {offsets = [0, 96], sizes = [8, 32], strides = [1, 1]} : vector<8x128xf32> to vector<8x32xf32>
    %170 = arith.negf %169 : vector<8x32xf32>
    %171 = math.exp %170 : vector<8x32xf32>
    %cst_42 = arith.constant 1.000000e+00 : f32
    %172 = vector.broadcast %cst_42 : f32 to vector<8x32xf32>
    %173 = arith.addf %172, %171 : vector<8x32xf32>
    %174 = arith.divf %172, %173 : vector<8x32xf32>
    %175 = arith.mulf %166, %143 : vector<8x32xf32>
    %176 = arith.mulf %160, %168 : vector<8x32xf32>
    %177 = arith.addf %175, %176 : vector<8x32xf32>
    %178 = math.tanh %177 : vector<8x32xf32>
    %179 = arith.mulf %174, %178 : vector<8x32xf32>
    %180 = arith.truncf %179 : vector<8x32xf32> to vector<8x32xbf16>
    %c4 = arith.constant 4 : index
    %c0_43 = arith.constant 0 : index
    %c0_44 = arith.constant 0 : index
    %181 = vector.load %arg13[%c4, %c0_43, %c0_44] : memref<8x8x32xbf16, #tpu.memory_space<vmem>>, vector<1x8x32xbf16>
    %182 = vector.shape_cast %181 : vector<1x8x32xbf16> to vector<8x32xbf16>
    %183 = vector.shape_cast %180 : vector<8x32xbf16> to vector<1x8x32xbf16>
    tpu.vector_store %arg13[%c4, %c0_43, %c0_44], %183 {strides = array<i32>} : memref<8x8x32xbf16, #tpu.memory_space<vmem>>, vector<1x8x32xbf16>,
    %184 = vector.extract_strided_slice %9 {offsets = [5, 0, 0], sizes = [1, 8, 128], strides = [1, 1, 1]} : vector<8x8x128xf32> to vector<1x8x128xf32>
    %185 = vector.shape_cast %184 : vector<1x8x128xf32> to vector<8x128xf32>
    %186 = arith.truncf %179 : vector<8x32xf32> to vector<8x32xbf16>
    %cst_45 = arith.constant dense<0.000000e+00> : vector<8x128xf32>
    %187 = tpu.matmul %186, %1, %cst_45 {dimension_numbers = #tpu.dot_dimension_numbers<[1], [0], [0], [1], [0, 0, 1, 1], [], []>} : vector<8x32xbf16>, vector<32x128xbf16>, vector<8x128xf32> -> vector<8x128xf32>
    %188 = arith.addf %185, %187 : vector<8x128xf32>
    %189 = vector.extract_strided_slice %188 {offsets = [0, 0], sizes = [8, 32], strides = [1, 1]} : vector<8x128xf32> to vector<8x32xf32>
    %190 = arith.negf %189 : vector<8x32xf32>
    %191 = math.exp %190 : vector<8x32xf32>
    %cst_46 = arith.constant 1.000000e+00 : f32
    %192 = vector.broadcast %cst_46 : f32 to vector<8x32xf32>
    %193 = arith.addf %192, %191 : vector<8x32xf32>
    %194 = arith.divf %192, %193 : vector<8x32xf32>
    %195 = vector.extract_strided_slice %188 {offsets = [0, 32], sizes = [8, 32], strides = [1, 1]} : vector<8x128xf32> to vector<8x32xf32>
    %196 = arith.negf %195 : vector<8x32xf32>
    %197 = math.exp %196 : vector<8x32xf32>
    %cst_47 = arith.constant 1.000000e+00 : f32
    %198 = vector.broadcast %cst_47 : f32 to vector<8x32xf32>
    %199 = arith.addf %198, %197 : vector<8x32xf32>
    %200 = arith.divf %198, %199 : vector<8x32xf32>
    %201 = vector.extract_strided_slice %188 {offsets = [0, 64], sizes = [8, 32], strides = [1, 1]} : vector<8x128xf32> to vector<8x32xf32>
    %202 = math.tanh %201 : vector<8x32xf32>
    %203 = vector.extract_strided_slice %188 {offsets = [0, 96], sizes = [8, 32], strides = [1, 1]} : vector<8x128xf32> to vector<8x32xf32>
    %204 = arith.negf %203 : vector<8x32xf32>
    %205 = math.exp %204 : vector<8x32xf32>
    %cst_48 = arith.constant 1.000000e+00 : f32
    %206 = vector.broadcast %cst_48 : f32 to vector<8x32xf32>
    %207 = arith.addf %206, %205 : vector<8x32xf32>
    %208 = arith.divf %206, %207 : vector<8x32xf32>
    %209 = arith.mulf %200, %177 : vector<8x32xf32>
    %210 = arith.mulf %194, %202 : vector<8x32xf32>
    %211 = arith.addf %209, %210 : vector<8x32xf32>
    %212 = math.tanh %211 : vector<8x32xf32>
    %213 = arith.mulf %208, %212 : vector<8x32xf32>
    %214 = arith.truncf %213 : vector<8x32xf32> to vector<8x32xbf16>
    %c5 = arith.constant 5 : index
    %c0_49 = arith.constant 0 : index
    %c0_50 = arith.constant 0 : index
    %215 = vector.load %arg13[%c5, %c0_49, %c0_50] : memref<8x8x32xbf16, #tpu.memory_space<vmem>>, vector<1x8x32xbf16>
    %216 = vector.shape_cast %215 : vector<1x8x32xbf16> to vector<8x32xbf16>
    %217 = vector.shape_cast %214 : vector<8x32xbf16> to vector<1x8x32xbf16>
    tpu.vector_store %arg13[%c5, %c0_49, %c0_50], %217 {strides = array<i32>} : memref<8x8x32xbf16, #tpu.memory_space<vmem>>, vector<1x8x32xbf16>,
    %218 = vector.extract_strided_slice %9 {offsets = [6, 0, 0], sizes = [1, 8, 128], strides = [1, 1, 1]} : vector<8x8x128xf32> to vector<1x8x128xf32>
    %219 = vector.shape_cast %218 : vector<1x8x128xf32> to vector<8x128xf32>
    %220 = arith.truncf %213 : vector<8x32xf32> to vector<8x32xbf16>
    %cst_51 = arith.constant dense<0.000000e+00> : vector<8x128xf32>
    %221 = tpu.matmul %220, %1, %cst_51 {dimension_numbers = #tpu.dot_dimension_numbers<[1], [0], [0], [1], [0, 0, 1, 1], [], []>} : vector<8x32xbf16>, vector<32x128xbf16>, vector<8x128xf32> -> vector<8x128xf32>
    %222 = arith.addf %219, %221 : vector<8x128xf32>
    %223 = vector.extract_strided_slice %222 {offsets = [0, 0], sizes = [8, 32], strides = [1, 1]} : vector<8x128xf32> to vector<8x32xf32>
    %224 = arith.negf %223 : vector<8x32xf32>
    %225 = math.exp %224 : vector<8x32xf32>
    %cst_52 = arith.constant 1.000000e+00 : f32
    %226 = vector.broadcast %cst_52 : f32 to vector<8x32xf32>
    %227 = arith.addf %226, %225 : vector<8x32xf32>
    %228 = arith.divf %226, %227 : vector<8x32xf32>
    %229 = vector.extract_strided_slice %222 {offsets = [0, 32], sizes = [8, 32], strides = [1, 1]} : vector<8x128xf32> to vector<8x32xf32>
    %230 = arith.negf %229 : vector<8x32xf32>
    %231 = math.exp %230 : vector<8x32xf32>
    %cst_53 = arith.constant 1.000000e+00 : f32
    %232 = vector.broadcast %cst_53 : f32 to vector<8x32xf32>
    %233 = arith.addf %232, %231 : vector<8x32xf32>
    %234 = arith.divf %232, %233 : vector<8x32xf32>
    %235 = vector.extract_strided_slice %222 {offsets = [0, 64], sizes = [8, 32], strides = [1, 1]} : vector<8x128xf32> to vector<8x32xf32>
    %236 = math.tanh %235 : vector<8x32xf32>
    %237 = vector.extract_strided_slice %222 {offsets = [0, 96], sizes = [8, 32], strides = [1, 1]} : vector<8x128xf32> to vector<8x32xf32>
    %238 = arith.negf %237 : vector<8x32xf32>
    %239 = math.exp %238 : vector<8x32xf32>
    %cst_54 = arith.constant 1.000000e+00 : f32
    %240 = vector.broadcast %cst_54 : f32 to vector<8x32xf32>
    %241 = arith.addf %240, %239 : vector<8x32xf32>
    %242 = arith.divf %240, %241 : vector<8x32xf32>
    %243 = arith.mulf %234, %211 : vector<8x32xf32>
    %244 = arith.mulf %228, %236 : vector<8x32xf32>
    %245 = arith.addf %243, %244 : vector<8x32xf32>
    %246 = math.tanh %245 : vector<8x32xf32>
    %247 = arith.mulf %242, %246 : vector<8x32xf32>
    %248 = arith.truncf %247 : vector<8x32xf32> to vector<8x32xbf16>
    %c6 = arith.constant 6 : index
    %c0_55 = arith.constant 0 : index
    %c0_56 = arith.constant 0 : index
    %249 = vector.load %arg13[%c6, %c0_55, %c0_56] : memref<8x8x32xbf16, #tpu.memory_space<vmem>>, vector<1x8x32xbf16>
    %250 = vector.shape_cast %249 : vector<1x8x32xbf16> to vector<8x32xbf16>
    %251 = vector.shape_cast %248 : vector<8x32xbf16> to vector<1x8x32xbf16>
    tpu.vector_store %arg13[%c6, %c0_55, %c0_56], %251 {strides = array<i32>} : memref<8x8x32xbf16, #tpu.memory_space<vmem>>, vector<1x8x32xbf16>,
    %252 = vector.extract_strided_slice %9 {offsets = [7, 0, 0], sizes = [1, 8, 128], strides = [1, 1, 1]} : vector<8x8x128xf32> to vector<1x8x128xf32>
    %253 = vector.shape_cast %252 : vector<1x8x128xf32> to vector<8x128xf32>
    %254 = arith.truncf %247 : vector<8x32xf32> to vector<8x32xbf16>
    %cst_57 = arith.constant dense<0.000000e+00> : vector<8x128xf32>
    %255 = tpu.matmul %254, %1, %cst_57 {dimension_numbers = #tpu.dot_dimension_numbers<[1], [0], [0], [1], [0, 0, 1, 1], [], []>} : vector<8x32xbf16>, vector<32x128xbf16>, vector<8x128xf32> -> vector<8x128xf32>
    %256 = arith.addf %253, %255 : vector<8x128xf32>
    %257 = vector.extract_strided_slice %256 {offsets = [0, 0], sizes = [8, 32], strides = [1, 1]} : vector<8x128xf32> to vector<8x32xf32>
    %258 = arith.negf %257 : vector<8x32xf32>
    %259 = math.exp %258 : vector<8x32xf32>
    %cst_58 = arith.constant 1.000000e+00 : f32
    %260 = vector.broadcast %cst_58 : f32 to vector<8x32xf32>
    %261 = arith.addf %260, %259 : vector<8x32xf32>
    %262 = arith.divf %260, %261 : vector<8x32xf32>
    %263 = vector.extract_strided_slice %256 {offsets = [0, 32], sizes = [8, 32], strides = [1, 1]} : vector<8x128xf32> to vector<8x32xf32>
    %264 = arith.negf %263 : vector<8x32xf32>
    %265 = math.exp %264 : vector<8x32xf32>
    %cst_59 = arith.constant 1.000000e+00 : f32
    %266 = vector.broadcast %cst_59 : f32 to vector<8x32xf32>
    %267 = arith.addf %266, %265 : vector<8x32xf32>
    %268 = arith.divf %266, %267 : vector<8x32xf32>
    %269 = vector.extract_strided_slice %256 {offsets = [0, 64], sizes = [8, 32], strides = [1, 1]} : vector<8x128xf32> to vector<8x32xf32>
    %270 = math.tanh %269 : vector<8x32xf32>
    %271 = vector.extract_strided_slice %256 {offsets = [0, 96], sizes = [8, 32], strides = [1, 1]} : vector<8x128xf32> to vector<8x32xf32>
    %272 = arith.negf %271 : vector<8x32xf32>
    %273 = math.exp %272 : vector<8x32xf32>
    %cst_60 = arith.constant 1.000000e+00 : f32
    %274 = vector.broadcast %cst_60 : f32 to vector<8x32xf32>
    %275 = arith.addf %274, %273 : vector<8x32xf32>
    %276 = arith.divf %274, %275 : vector<8x32xf32>
    %277 = arith.mulf %268, %245 : vector<8x32xf32>
    %278 = arith.mulf %262, %270 : vector<8x32xf32>
    %279 = arith.addf %277, %278 : vector<8x32xf32>
    %280 = math.tanh %279 : vector<8x32xf32>
    %281 = arith.mulf %276, %280 : vector<8x32xf32>
    %282 = arith.truncf %281 : vector<8x32xf32> to vector<8x32xbf16>
    %c7 = arith.constant 7 : index
    %c0_61 = arith.constant 0 : index
    %c0_62 = arith.constant 0 : index
    %283 = vector.load %arg13[%c7, %c0_61, %c0_62] : memref<8x8x32xbf16, #tpu.memory_space<vmem>>, vector<1x8x32xbf16>
    %284 = vector.shape_cast %283 : vector<1x8x32xbf16> to vector<8x32xbf16>
    %285 = vector.shape_cast %282 : vector<8x32xbf16> to vector<1x8x32xbf16>
    tpu.vector_store %arg13[%c7, %c0_61, %c0_62], %285 {strides = array<i32>} : memref<8x8x32xbf16, #tpu.memory_space<vmem>>, vector<1x8x32xbf16>,
    %c0_63 = arith.constant 0 : index
    %c0_64 = arith.constant 0 : index
    %c0_65 = arith.constant 0 : index
    %286 = vector.load %arg11[%c0_63, %c0_64, %c0_65] : memref<2x8x32xf32, #tpu.memory_space<vmem>>, vector<1x8x32xf32>
    %287 = vector.shape_cast %286 : vector<1x8x32xf32> to vector<8x32xf32>
    %288 = vector.shape_cast %281 : vector<8x32xf32> to vector<1x8x32xf32>
    tpu.vector_store %arg11[%c0_63, %c0_64, %c0_65], %288 {strides = array<i32>} : memref<2x8x32xf32, #tpu.memory_space<vmem>>, vector<1x8x32xf32>,
    %c0_66 = arith.constant 0 : index
    %c0_67 = arith.constant 0 : index
    %c0_68 = arith.constant 0 : index
    %289 = vector.load %arg12[%c0_66, %c0_67, %c0_68] : memref<2x8x32xf32, #tpu.memory_space<vmem>>, vector<1x8x32xf32>
    %290 = vector.shape_cast %289 : vector<1x8x32xf32> to vector<8x32xf32>
    %291 = vector.shape_cast %279 : vector<8x32xf32> to vector<1x8x32xf32>
    tpu.vector_store %arg12[%c0_66, %c0_67, %c0_68], %291 {strides = array<i32>} : memref<2x8x32xf32, #tpu.memory_space<vmem>>, vector<1x8x32xf32>,
    %c0_69 = arith.constant 0 : index
    %c0_70 = arith.constant 0 : index
    %292 = vector.load %arg5[%c0_69, %c0_70] : memref<32x128xbf16, #tpu.memory_space<vmem>>, vector<32x128xbf16>
    %c0_71 = arith.constant 0 : index
    %c0_72 = arith.constant 0 : index
    %293 = vector.load %arg6[%c0_71, %c0_72] : memref<32x128xbf16, #tpu.memory_space<vmem>>, vector<32x128xbf16>
    %c0_73 = arith.constant 0 : index
    %c0_74 = arith.constant 0 : index
    %294 = vector.load %arg7[%c0_73, %c0_74] : memref<1x128xf32, #tpu.memory_space<vmem>>, vector<1x128xf32>
    %c0_75 = arith.constant 0 : index
    %c0_76 = arith.constant 0 : index
    %c0_77 = arith.constant 0 : index
    %295 = vector.load %arg13[%c0_75, %c0_76, %c0_77] : memref<8x8x32xbf16, #tpu.memory_space<vmem>>, vector<8x8x32xbf16>
    %296 = vector.shape_cast %295 : vector<8x8x32xbf16> to vector<64x32xbf16>
    %cst_78 = arith.constant dense<0.000000e+00> : vector<64x128xf32>
    %297 = tpu.matmul %296, %292, %cst_78 {dimension_numbers = #tpu.dot_dimension_numbers<[1], [0], [0], [1], [0, 0, 1, 1], [], []>} : vector<64x32xbf16>, vector<32x128xbf16>, vector<64x128xf32> -> vector<64x128xf32>
    %298 = vector.broadcast %294 : vector<1x128xf32> to vector<64x128xf32>
    %299 = arith.addf %297, %298 : vector<64x128xf32>
    %300 = vector.shape_cast %299 : vector<64x128xf32> to vector<8x8x128xf32>
    %c1_79 = arith.constant 1 : index
    %c0_80 = arith.constant 0 : index
    %c0_81 = arith.constant 0 : index
    %301 = vector.load %arg8[%c1_79, %c0_80, %c0_81] : memref<2x8x32xf32, #tpu.memory_space<vmem>>, vector<1x8x32xf32>
    %302 = vector.shape_cast %301 : vector<1x8x32xf32> to vector<8x32xf32>
    %c1_82 = arith.constant 1 : index
    %c0_83 = arith.constant 0 : index
    %c0_84 = arith.constant 0 : index
    %303 = vector.load %arg9[%c1_82, %c0_83, %c0_84] : memref<2x8x32xf32, #tpu.memory_space<vmem>>, vector<1x8x32xf32>
    %304 = vector.shape_cast %303 : vector<1x8x32xf32> to vector<8x32xf32>
    %305 = vector.extract_strided_slice %300 {offsets = [0, 0, 0], sizes = [1, 8, 128], strides = [1, 1, 1]} : vector<8x8x128xf32> to vector<1x8x128xf32>
    %306 = vector.shape_cast %305 : vector<1x8x128xf32> to vector<8x128xf32>
    %307 = arith.truncf %302 : vector<8x32xf32> to vector<8x32xbf16>
    %cst_85 = arith.constant dense<0.000000e+00> : vector<8x128xf32>
    %308 = tpu.matmul %307, %293, %cst_85 {dimension_numbers = #tpu.dot_dimension_numbers<[1], [0], [0], [1], [0, 0, 1, 1], [], []>} : vector<8x32xbf16>, vector<32x128xbf16>, vector<8x128xf32> -> vector<8x128xf32>
    %309 = arith.addf %306, %308 : vector<8x128xf32>
    %310 = vector.extract_strided_slice %309 {offsets = [0, 0], sizes = [8, 32], strides = [1, 1]} : vector<8x128xf32> to vector<8x32xf32>
    %311 = arith.negf %310 : vector<8x32xf32>
    %312 = math.exp %311 : vector<8x32xf32>
    %cst_86 = arith.constant 1.000000e+00 : f32
    %313 = vector.broadcast %cst_86 : f32 to vector<8x32xf32>
    %314 = arith.addf %313, %312 : vector<8x32xf32>
    %315 = arith.divf %313, %314 : vector<8x32xf32>
    %316 = vector.extract_strided_slice %309 {offsets = [0, 32], sizes = [8, 32], strides = [1, 1]} : vector<8x128xf32> to vector<8x32xf32>
    %317 = arith.negf %316 : vector<8x32xf32>
    %318 = math.exp %317 : vector<8x32xf32>
    %cst_87 = arith.constant 1.000000e+00 : f32
    %319 = vector.broadcast %cst_87 : f32 to vector<8x32xf32>
    %320 = arith.addf %319, %318 : vector<8x32xf32>
    %321 = arith.divf %319, %320 : vector<8x32xf32>
    %322 = vector.extract_strided_slice %309 {offsets = [0, 64], sizes = [8, 32], strides = [1, 1]} : vector<8x128xf32> to vector<8x32xf32>
    %323 = math.tanh %322 : vector<8x32xf32>
    %324 = vector.extract_strided_slice %309 {offsets = [0, 96], sizes = [8, 32], strides = [1, 1]} : vector<8x128xf32> to vector<8x32xf32>
    %325 = arith.negf %324 : vector<8x32xf32>
    %326 = math.exp %325 : vector<8x32xf32>
    %cst_88 = arith.constant 1.000000e+00 : f32
    %327 = vector.broadcast %cst_88 : f32 to vector<8x32xf32>
    %328 = arith.addf %327, %326 : vector<8x32xf32>
    %329 = arith.divf %327, %328 : vector<8x32xf32>
    %330 = arith.mulf %321, %304 : vector<8x32xf32>
    %331 = arith.mulf %315, %323 : vector<8x32xf32>
    %332 = arith.addf %330, %331 : vector<8x32xf32>
    %333 = math.tanh %332 : vector<8x32xf32>
    %334 = arith.mulf %329, %333 : vector<8x32xf32>
    %c0_89 = arith.constant 0 : index
    %c0_90 = arith.constant 0 : index
    %c0_91 = arith.constant 0 : index
    %335 = vector.load %arg10[%c0_89, %c0_90, %c0_91] : memref<8x8x32xf32, #tpu.memory_space<vmem>>, vector<1x8x32xf32>
    %336 = vector.shape_cast %335 : vector<1x8x32xf32> to vector<8x32xf32>
    %337 = vector.shape_cast %334 : vector<8x32xf32> to vector<1x8x32xf32>
    tpu.vector_store %arg10[%c0_89, %c0_90, %c0_91], %337 {strides = array<i32>} : memref<8x8x32xf32, #tpu.memory_space<vmem>>, vector<1x8x32xf32>,
    %338 = vector.extract_strided_slice %300 {offsets = [1, 0, 0], sizes = [1, 8, 128], strides = [1, 1, 1]} : vector<8x8x128xf32> to vector<1x8x128xf32>
    %339 = vector.shape_cast %338 : vector<1x8x128xf32> to vector<8x128xf32>
    %340 = arith.truncf %334 : vector<8x32xf32> to vector<8x32xbf16>
    %cst_92 = arith.constant dense<0.000000e+00> : vector<8x128xf32>
    %341 = tpu.matmul %340, %293, %cst_92 {dimension_numbers = #tpu.dot_dimension_numbers<[1], [0], [0], [1], [0, 0, 1, 1], [], []>} : vector<8x32xbf16>, vector<32x128xbf16>, vector<8x128xf32> -> vector<8x128xf32>
    %342 = arith.addf %339, %341 : vector<8x128xf32>
    %343 = vector.extract_strided_slice %342 {offsets = [0, 0], sizes = [8, 32], strides = [1, 1]} : vector<8x128xf32> to vector<8x32xf32>
    %344 = arith.negf %343 : vector<8x32xf32>
    %345 = math.exp %344 : vector<8x32xf32>
    %cst_93 = arith.constant 1.000000e+00 : f32
    %346 = vector.broadcast %cst_93 : f32 to vector<8x32xf32>
    %347 = arith.addf %346, %345 : vector<8x32xf32>
    %348 = arith.divf %346, %347 : vector<8x32xf32>
    %349 = vector.extract_strided_slice %342 {offsets = [0, 32], sizes = [8, 32], strides = [1, 1]} : vector<8x128xf32> to vector<8x32xf32>
    %350 = arith.negf %349 : vector<8x32xf32>
    %351 = math.exp %350 : vector<8x32xf32>
    %cst_94 = arith.constant 1.000000e+00 : f32
    %352 = vector.broadcast %cst_94 : f32 to vector<8x32xf32>
    %353 = arith.addf %352, %351 : vector<8x32xf32>
    %354 = arith.divf %352, %353 : vector<8x32xf32>
    %355 = vector.extract_strided_slice %342 {offsets = [0, 64], sizes = [8, 32], strides = [1, 1]} : vector<8x128xf32> to vector<8x32xf32>
    %356 = math.tanh %355 : vector<8x32xf32>
    %357 = vector.extract_strided_slice %342 {offsets = [0, 96], sizes = [8, 32], strides = [1, 1]} : vector<8x128xf32> to vector<8x32xf32>
    %358 = arith.negf %357 : vector<8x32xf32>
    %359 = math.exp %358 : vector<8x32xf32>
    %cst_95 = arith.constant 1.000000e+00 : f32
    %360 = vector.broadcast %cst_95 : f32 to vector<8x32xf32>
    %361 = arith.addf %360, %359 : vector<8x32xf32>
    %362 = arith.divf %360, %361 : vector<8x32xf32>
    %363 = arith.mulf %354, %332 : vector<8x32xf32>
    %364 = arith.mulf %348, %356 : vector<8x32xf32>
    %365 = arith.addf %363, %364 : vector<8x32xf32>
    %366 = math.tanh %365 : vector<8x32xf32>
    %367 = arith.mulf %362, %366 : vector<8x32xf32>
    %c1_96 = arith.constant 1 : index
    %c0_97 = arith.constant 0 : index
    %c0_98 = arith.constant 0 : index
    %368 = vector.load %arg10[%c1_96, %c0_97, %c0_98] : memref<8x8x32xf32, #tpu.memory_space<vmem>>, vector<1x8x32xf32>
    %369 = vector.shape_cast %368 : vector<1x8x32xf32> to vector<8x32xf32>
    %370 = vector.shape_cast %367 : vector<8x32xf32> to vector<1x8x32xf32>
    tpu.vector_store %arg10[%c1_96, %c0_97, %c0_98], %370 {strides = array<i32>} : memref<8x8x32xf32, #tpu.memory_space<vmem>>, vector<1x8x32xf32>,
    %371 = vector.extract_strided_slice %300 {offsets = [2, 0, 0], sizes = [1, 8, 128], strides = [1, 1, 1]} : vector<8x8x128xf32> to vector<1x8x128xf32>
    %372 = vector.shape_cast %371 : vector<1x8x128xf32> to vector<8x128xf32>
    %373 = arith.truncf %367 : vector<8x32xf32> to vector<8x32xbf16>
    %cst_99 = arith.constant dense<0.000000e+00> : vector<8x128xf32>
    %374 = tpu.matmul %373, %293, %cst_99 {dimension_numbers = #tpu.dot_dimension_numbers<[1], [0], [0], [1], [0, 0, 1, 1], [], []>} : vector<8x32xbf16>, vector<32x128xbf16>, vector<8x128xf32> -> vector<8x128xf32>
    %375 = arith.addf %372, %374 : vector<8x128xf32>
    %376 = vector.extract_strided_slice %375 {offsets = [0, 0], sizes = [8, 32], strides = [1, 1]} : vector<8x128xf32> to vector<8x32xf32>
    %377 = arith.negf %376 : vector<8x32xf32>
    %378 = math.exp %377 : vector<8x32xf32>
    %cst_100 = arith.constant 1.000000e+00 : f32
    %379 = vector.broadcast %cst_100 : f32 to vector<8x32xf32>
    %380 = arith.addf %379, %378 : vector<8x32xf32>
    %381 = arith.divf %379, %380 : vector<8x32xf32>
    %382 = vector.extract_strided_slice %375 {offsets = [0, 32], sizes = [8, 32], strides = [1, 1]} : vector<8x128xf32> to vector<8x32xf32>
    %383 = arith.negf %382 : vector<8x32xf32>
    %384 = math.exp %383 : vector<8x32xf32>
    %cst_101 = arith.constant 1.000000e+00 : f32
    %385 = vector.broadcast %cst_101 : f32 to vector<8x32xf32>
    %386 = arith.addf %385, %384 : vector<8x32xf32>
    %387 = arith.divf %385, %386 : vector<8x32xf32>
    %388 = vector.extract_strided_slice %375 {offsets = [0, 64], sizes = [8, 32], strides = [1, 1]} : vector<8x128xf32> to vector<8x32xf32>
    %389 = math.tanh %388 : vector<8x32xf32>
    %390 = vector.extract_strided_slice %375 {offsets = [0, 96], sizes = [8, 32], strides = [1, 1]} : vector<8x128xf32> to vector<8x32xf32>
    %391 = arith.negf %390 : vector<8x32xf32>
    %392 = math.exp %391 : vector<8x32xf32>
    %cst_102 = arith.constant 1.000000e+00 : f32
    %393 = vector.broadcast %cst_102 : f32 to vector<8x32xf32>
    %394 = arith.addf %393, %392 : vector<8x32xf32>
    %395 = arith.divf %393, %394 : vector<8x32xf32>
    %396 = arith.mulf %387, %365 : vector<8x32xf32>
    %397 = arith.mulf %381, %389 : vector<8x32xf32>
    %398 = arith.addf %396, %397 : vector<8x32xf32>
    %399 = math.tanh %398 : vector<8x32xf32>
    %400 = arith.mulf %395, %399 : vector<8x32xf32>
    %c2_103 = arith.constant 2 : index
    %c0_104 = arith.constant 0 : index
    %c0_105 = arith.constant 0 : index
    %401 = vector.load %arg10[%c2_103, %c0_104, %c0_105] : memref<8x8x32xf32, #tpu.memory_space<vmem>>, vector<1x8x32xf32>
    %402 = vector.shape_cast %401 : vector<1x8x32xf32> to vector<8x32xf32>
    %403 = vector.shape_cast %400 : vector<8x32xf32> to vector<1x8x32xf32>
    tpu.vector_store %arg10[%c2_103, %c0_104, %c0_105], %403 {strides = array<i32>} : memref<8x8x32xf32, #tpu.memory_space<vmem>>, vector<1x8x32xf32>,
    %404 = vector.extract_strided_slice %300 {offsets = [3, 0, 0], sizes = [1, 8, 128], strides = [1, 1, 1]} : vector<8x8x128xf32> to vector<1x8x128xf32>
    %405 = vector.shape_cast %404 : vector<1x8x128xf32> to vector<8x128xf32>
    %406 = arith.truncf %400 : vector<8x32xf32> to vector<8x32xbf16>
    %cst_106 = arith.constant dense<0.000000e+00> : vector<8x128xf32>
    %407 = tpu.matmul %406, %293, %cst_106 {dimension_numbers = #tpu.dot_dimension_numbers<[1], [0], [0], [1], [0, 0, 1, 1], [], []>} : vector<8x32xbf16>, vector<32x128xbf16>, vector<8x128xf32> -> vector<8x128xf32>
    %408 = arith.addf %405, %407 : vector<8x128xf32>
    %409 = vector.extract_strided_slice %408 {offsets = [0, 0], sizes = [8, 32], strides = [1, 1]} : vector<8x128xf32> to vector<8x32xf32>
    %410 = arith.negf %409 : vector<8x32xf32>
    %411 = math.exp %410 : vector<8x32xf32>
    %cst_107 = arith.constant 1.000000e+00 : f32
    %412 = vector.broadcast %cst_107 : f32 to vector<8x32xf32>
    %413 = arith.addf %412, %411 : vector<8x32xf32>
    %414 = arith.divf %412, %413 : vector<8x32xf32>
    %415 = vector.extract_strided_slice %408 {offsets = [0, 32], sizes = [8, 32], strides = [1, 1]} : vector<8x128xf32> to vector<8x32xf32>
    %416 = arith.negf %415 : vector<8x32xf32>
    %417 = math.exp %416 : vector<8x32xf32>
    %cst_108 = arith.constant 1.000000e+00 : f32
    %418 = vector.broadcast %cst_108 : f32 to vector<8x32xf32>
    %419 = arith.addf %418, %417 : vector<8x32xf32>
    %420 = arith.divf %418, %419 : vector<8x32xf32>
    %421 = vector.extract_strided_slice %408 {offsets = [0, 64], sizes = [8, 32], strides = [1, 1]} : vector<8x128xf32> to vector<8x32xf32>
    %422 = math.tanh %421 : vector<8x32xf32>
    %423 = vector.extract_strided_slice %408 {offsets = [0, 96], sizes = [8, 32], strides = [1, 1]} : vector<8x128xf32> to vector<8x32xf32>
    %424 = arith.negf %423 : vector<8x32xf32>
    %425 = math.exp %424 : vector<8x32xf32>
    %cst_109 = arith.constant 1.000000e+00 : f32
    %426 = vector.broadcast %cst_109 : f32 to vector<8x32xf32>
    %427 = arith.addf %426, %425 : vector<8x32xf32>
    %428 = arith.divf %426, %427 : vector<8x32xf32>
    %429 = arith.mulf %420, %398 : vector<8x32xf32>
    %430 = arith.mulf %414, %422 : vector<8x32xf32>
    %431 = arith.addf %429, %430 : vector<8x32xf32>
    %432 = math.tanh %431 : vector<8x32xf32>
    %433 = arith.mulf %428, %432 : vector<8x32xf32>
    %c3_110 = arith.constant 3 : index
    %c0_111 = arith.constant 0 : index
    %c0_112 = arith.constant 0 : index
    %434 = vector.load %arg10[%c3_110, %c0_111, %c0_112] : memref<8x8x32xf32, #tpu.memory_space<vmem>>, vector<1x8x32xf32>
    %435 = vector.shape_cast %434 : vector<1x8x32xf32> to vector<8x32xf32>
    %436 = vector.shape_cast %433 : vector<8x32xf32> to vector<1x8x32xf32>
    tpu.vector_store %arg10[%c3_110, %c0_111, %c0_112], %436 {strides = array<i32>} : memref<8x8x32xf32, #tpu.memory_space<vmem>>, vector<1x8x32xf32>,
    %437 = vector.extract_strided_slice %300 {offsets = [4, 0, 0], sizes = [1, 8, 128], strides = [1, 1, 1]} : vector<8x8x128xf32> to vector<1x8x128xf32>
    %438 = vector.shape_cast %437 : vector<1x8x128xf32> to vector<8x128xf32>
    %439 = arith.truncf %433 : vector<8x32xf32> to vector<8x32xbf16>
    %cst_113 = arith.constant dense<0.000000e+00> : vector<8x128xf32>
    %440 = tpu.matmul %439, %293, %cst_113 {dimension_numbers = #tpu.dot_dimension_numbers<[1], [0], [0], [1], [0, 0, 1, 1], [], []>} : vector<8x32xbf16>, vector<32x128xbf16>, vector<8x128xf32> -> vector<8x128xf32>
    %441 = arith.addf %438, %440 : vector<8x128xf32>
    %442 = vector.extract_strided_slice %441 {offsets = [0, 0], sizes = [8, 32], strides = [1, 1]} : vector<8x128xf32> to vector<8x32xf32>
    %443 = arith.negf %442 : vector<8x32xf32>
    %444 = math.exp %443 : vector<8x32xf32>
    %cst_114 = arith.constant 1.000000e+00 : f32
    %445 = vector.broadcast %cst_114 : f32 to vector<8x32xf32>
    %446 = arith.addf %445, %444 : vector<8x32xf32>
    %447 = arith.divf %445, %446 : vector<8x32xf32>
    %448 = vector.extract_strided_slice %441 {offsets = [0, 32], sizes = [8, 32], strides = [1, 1]} : vector<8x128xf32> to vector<8x32xf32>
    %449 = arith.negf %448 : vector<8x32xf32>
    %450 = math.exp %449 : vector<8x32xf32>
    %cst_115 = arith.constant 1.000000e+00 : f32
    %451 = vector.broadcast %cst_115 : f32 to vector<8x32xf32>
    %452 = arith.addf %451, %450 : vector<8x32xf32>
    %453 = arith.divf %451, %452 : vector<8x32xf32>
    %454 = vector.extract_strided_slice %441 {offsets = [0, 64], sizes = [8, 32], strides = [1, 1]} : vector<8x128xf32> to vector<8x32xf32>
    %455 = math.tanh %454 : vector<8x32xf32>
    %456 = vector.extract_strided_slice %441 {offsets = [0, 96], sizes = [8, 32], strides = [1, 1]} : vector<8x128xf32> to vector<8x32xf32>
    %457 = arith.negf %456 : vector<8x32xf32>
    %458 = math.exp %457 : vector<8x32xf32>
    %cst_116 = arith.constant 1.000000e+00 : f32
    %459 = vector.broadcast %cst_116 : f32 to vector<8x32xf32>
    %460 = arith.addf %459, %458 : vector<8x32xf32>
    %461 = arith.divf %459, %460 : vector<8x32xf32>
    %462 = arith.mulf %453, %431 : vector<8x32xf32>
    %463 = arith.mulf %447, %455 : vector<8x32xf32>
    %464 = arith.addf %462, %463 : vector<8x32xf32>
    %465 = math.tanh %464 : vector<8x32xf32>
    %466 = arith.mulf %461, %465 : vector<8x32xf32>
    %c4_117 = arith.constant 4 : index
    %c0_118 = arith.constant 0 : index
    %c0_119 = arith.constant 0 : index
    %467 = vector.load %arg10[%c4_117, %c0_118, %c0_119] : memref<8x8x32xf32, #tpu.memory_space<vmem>>, vector<1x8x32xf32>
    %468 = vector.shape_cast %467 : vector<1x8x32xf32> to vector<8x32xf32>
    %469 = vector.shape_cast %466 : vector<8x32xf32> to vector<1x8x32xf32>
    tpu.vector_store %arg10[%c4_117, %c0_118, %c0_119], %469 {strides = array<i32>} : memref<8x8x32xf32, #tpu.memory_space<vmem>>, vector<1x8x32xf32>,
    %470 = vector.extract_strided_slice %300 {offsets = [5, 0, 0], sizes = [1, 8, 128], strides = [1, 1, 1]} : vector<8x8x128xf32> to vector<1x8x128xf32>
    %471 = vector.shape_cast %470 : vector<1x8x128xf32> to vector<8x128xf32>
    %472 = arith.truncf %466 : vector<8x32xf32> to vector<8x32xbf16>
    %cst_120 = arith.constant dense<0.000000e+00> : vector<8x128xf32>
    %473 = tpu.matmul %472, %293, %cst_120 {dimension_numbers = #tpu.dot_dimension_numbers<[1], [0], [0], [1], [0, 0, 1, 1], [], []>} : vector<8x32xbf16>, vector<32x128xbf16>, vector<8x128xf32> -> vector<8x128xf32>
    %474 = arith.addf %471, %473 : vector<8x128xf32>
    %475 = vector.extract_strided_slice %474 {offsets = [0, 0], sizes = [8, 32], strides = [1, 1]} : vector<8x128xf32> to vector<8x32xf32>
    %476 = arith.negf %475 : vector<8x32xf32>
    %477 = math.exp %476 : vector<8x32xf32>
    %cst_121 = arith.constant 1.000000e+00 : f32
    %478 = vector.broadcast %cst_121 : f32 to vector<8x32xf32>
    %479 = arith.addf %478, %477 : vector<8x32xf32>
    %480 = arith.divf %478, %479 : vector<8x32xf32>
    %481 = vector.extract_strided_slice %474 {offsets = [0, 32], sizes = [8, 32], strides = [1, 1]} : vector<8x128xf32> to vector<8x32xf32>
    %482 = arith.negf %481 : vector<8x32xf32>
    %483 = math.exp %482 : vector<8x32xf32>
    %cst_122 = arith.constant 1.000000e+00 : f32
    %484 = vector.broadcast %cst_122 : f32 to vector<8x32xf32>
    %485 = arith.addf %484, %483 : vector<8x32xf32>
    %486 = arith.divf %484, %485 : vector<8x32xf32>
    %487 = vector.extract_strided_slice %474 {offsets = [0, 64], sizes = [8, 32], strides = [1, 1]} : vector<8x128xf32> to vector<8x32xf32>
    %488 = math.tanh %487 : vector<8x32xf32>
    %489 = vector.extract_strided_slice %474 {offsets = [0, 96], sizes = [8, 32], strides = [1, 1]} : vector<8x128xf32> to vector<8x32xf32>
    %490 = arith.negf %489 : vector<8x32xf32>
    %491 = math.exp %490 : vector<8x32xf32>
    %cst_123 = arith.constant 1.000000e+00 : f32
    %492 = vector.broadcast %cst_123 : f32 to vector<8x32xf32>
    %493 = arith.addf %492, %491 : vector<8x32xf32>
    %494 = arith.divf %492, %493 : vector<8x32xf32>
    %495 = arith.mulf %486, %464 : vector<8x32xf32>
    %496 = arith.mulf %480, %488 : vector<8x32xf32>
    %497 = arith.addf %495, %496 : vector<8x32xf32>
    %498 = math.tanh %497 : vector<8x32xf32>
    %499 = arith.mulf %494, %498 : vector<8x32xf32>
    %c5_124 = arith.constant 5 : index
    %c0_125 = arith.constant 0 : index
    %c0_126 = arith.constant 0 : index
    %500 = vector.load %arg10[%c5_124, %c0_125, %c0_126] : memref<8x8x32xf32, #tpu.memory_space<vmem>>, vector<1x8x32xf32>
    %501 = vector.shape_cast %500 : vector<1x8x32xf32> to vector<8x32xf32>
    %502 = vector.shape_cast %499 : vector<8x32xf32> to vector<1x8x32xf32>
    tpu.vector_store %arg10[%c5_124, %c0_125, %c0_126], %502 {strides = array<i32>} : memref<8x8x32xf32, #tpu.memory_space<vmem>>, vector<1x8x32xf32>,
    %503 = vector.extract_strided_slice %300 {offsets = [6, 0, 0], sizes = [1, 8, 128], strides = [1, 1, 1]} : vector<8x8x128xf32> to vector<1x8x128xf32>
    %504 = vector.shape_cast %503 : vector<1x8x128xf32> to vector<8x128xf32>
    %505 = arith.truncf %499 : vector<8x32xf32> to vector<8x32xbf16>
    %cst_127 = arith.constant dense<0.000000e+00> : vector<8x128xf32>
    %506 = tpu.matmul %505, %293, %cst_127 {dimension_numbers = #tpu.dot_dimension_numbers<[1], [0], [0], [1], [0, 0, 1, 1], [], []>} : vector<8x32xbf16>, vector<32x128xbf16>, vector<8x128xf32> -> vector<8x128xf32>
    %507 = arith.addf %504, %506 : vector<8x128xf32>
    %508 = vector.extract_strided_slice %507 {offsets = [0, 0], sizes = [8, 32], strides = [1, 1]} : vector<8x128xf32> to vector<8x32xf32>
    %509 = arith.negf %508 : vector<8x32xf32>
    %510 = math.exp %509 : vector<8x32xf32>
    %cst_128 = arith.constant 1.000000e+00 : f32
    %511 = vector.broadcast %cst_128 : f32 to vector<8x32xf32>
    %512 = arith.addf %511, %510 : vector<8x32xf32>
    %513 = arith.divf %511, %512 : vector<8x32xf32>
    %514 = vector.extract_strided_slice %507 {offsets = [0, 32], sizes = [8, 32], strides = [1, 1]} : vector<8x128xf32> to vector<8x32xf32>
    %515 = arith.negf %514 : vector<8x32xf32>
    %516 = math.exp %515 : vector<8x32xf32>
    %cst_129 = arith.constant 1.000000e+00 : f32
    %517 = vector.broadcast %cst_129 : f32 to vector<8x32xf32>
    %518 = arith.addf %517, %516 : vector<8x32xf32>
    %519 = arith.divf %517, %518 : vector<8x32xf32>
    %520 = vector.extract_strided_slice %507 {offsets = [0, 64], sizes = [8, 32], strides = [1, 1]} : vector<8x128xf32> to vector<8x32xf32>
    %521 = math.tanh %520 : vector<8x32xf32>
    %522 = vector.extract_strided_slice %507 {offsets = [0, 96], sizes = [8, 32], strides = [1, 1]} : vector<8x128xf32> to vector<8x32xf32>
    %523 = arith.negf %522 : vector<8x32xf32>
    %524 = math.exp %523 : vector<8x32xf32>
    %cst_130 = arith.constant 1.000000e+00 : f32
    %525 = vector.broadcast %cst_130 : f32 to vector<8x32xf32>
    %526 = arith.addf %525, %524 : vector<8x32xf32>
    %527 = arith.divf %525, %526 : vector<8x32xf32>
    %528 = arith.mulf %519, %497 : vector<8x32xf32>
    %529 = arith.mulf %513, %521 : vector<8x32xf32>
    %530 = arith.addf %528, %529 : vector<8x32xf32>
    %531 = math.tanh %530 : vector<8x32xf32>
    %532 = arith.mulf %527, %531 : vector<8x32xf32>
    %c6_131 = arith.constant 6 : index
    %c0_132 = arith.constant 0 : index
    %c0_133 = arith.constant 0 : index
    %533 = vector.load %arg10[%c6_131, %c0_132, %c0_133] : memref<8x8x32xf32, #tpu.memory_space<vmem>>, vector<1x8x32xf32>
    %534 = vector.shape_cast %533 : vector<1x8x32xf32> to vector<8x32xf32>
    %535 = vector.shape_cast %532 : vector<8x32xf32> to vector<1x8x32xf32>
    tpu.vector_store %arg10[%c6_131, %c0_132, %c0_133], %535 {strides = array<i32>} : memref<8x8x32xf32, #tpu.memory_space<vmem>>, vector<1x8x32xf32>,
    %536 = vector.extract_strided_slice %300 {offsets = [7, 0, 0], sizes = [1, 8, 128], strides = [1, 1, 1]} : vector<8x8x128xf32> to vector<1x8x128xf32>
    %537 = vector.shape_cast %536 : vector<1x8x128xf32> to vector<8x128xf32>
    %538 = arith.truncf %532 : vector<8x32xf32> to vector<8x32xbf16>
    %cst_134 = arith.constant dense<0.000000e+00> : vector<8x128xf32>
    %539 = tpu.matmul %538, %293, %cst_134 {dimension_numbers = #tpu.dot_dimension_numbers<[1], [0], [0], [1], [0, 0, 1, 1], [], []>} : vector<8x32xbf16>, vector<32x128xbf16>, vector<8x128xf32> -> vector<8x128xf32>
    %540 = arith.addf %537, %539 : vector<8x128xf32>
    %541 = vector.extract_strided_slice %540 {offsets = [0, 0], sizes = [8, 32], strides = [1, 1]} : vector<8x128xf32> to vector<8x32xf32>
    %542 = arith.negf %541 : vector<8x32xf32>
    %543 = math.exp %542 : vector<8x32xf32>
    %cst_135 = arith.constant 1.000000e+00 : f32
    %544 = vector.broadcast %cst_135 : f32 to vector<8x32xf32>
    %545 = arith.addf %544, %543 : vector<8x32xf32>
    %546 = arith.divf %544, %545 : vector<8x32xf32>
    %547 = vector.extract_strided_slice %540 {offsets = [0, 32], sizes = [8, 32], strides = [1, 1]} : vector<8x128xf32> to vector<8x32xf32>
    %548 = arith.negf %547 : vector<8x32xf32>
    %549 = math.exp %548 : vector<8x32xf32>
    %cst_136 = arith.constant 1.000000e+00 : f32
    %550 = vector.broadcast %cst_136 : f32 to vector<8x32xf32>
    %551 = arith.addf %550, %549 : vector<8x32xf32>
    %552 = arith.divf %550, %551 : vector<8x32xf32>
    %553 = vector.extract_strided_slice %540 {offsets = [0, 64], sizes = [8, 32], strides = [1, 1]} : vector<8x128xf32> to vector<8x32xf32>
    %554 = math.tanh %553 : vector<8x32xf32>
    %555 = vector.extract_strided_slice %540 {offsets = [0, 96], sizes = [8, 32], strides = [1, 1]} : vector<8x128xf32> to vector<8x32xf32>
    %556 = arith.negf %555 : vector<8x32xf32>
    %557 = math.exp %556 : vector<8x32xf32>
    %cst_137 = arith.constant 1.000000e+00 : f32
    %558 = vector.broadcast %cst_137 : f32 to vector<8x32xf32>
    %559 = arith.addf %558, %557 : vector<8x32xf32>
    %560 = arith.divf %558, %559 : vector<8x32xf32>
    %561 = arith.mulf %552, %530 : vector<8x32xf32>
    %562 = arith.mulf %546, %554 : vector<8x32xf32>
    %563 = arith.addf %561, %562 : vector<8x32xf32>
    %564 = math.tanh %563 : vector<8x32xf32>
    %565 = arith.mulf %560, %564 : vector<8x32xf32>
    %c7_138 = arith.constant 7 : index
    %c0_139 = arith.constant 0 : index
    %c0_140 = arith.constant 0 : index
    %566 = vector.load %arg10[%c7_138, %c0_139, %c0_140] : memref<8x8x32xf32, #tpu.memory_space<vmem>>, vector<1x8x32xf32>
    %567 = vector.shape_cast %566 : vector<1x8x32xf32> to vector<8x32xf32>
    %568 = vector.shape_cast %565 : vector<8x32xf32> to vector<1x8x32xf32>
    tpu.vector_store %arg10[%c7_138, %c0_139, %c0_140], %568 {strides = array<i32>} : memref<8x8x32xf32, #tpu.memory_space<vmem>>, vector<1x8x32xf32>,
    %c1_141 = arith.constant 1 : index
    %c0_142 = arith.constant 0 : index
    %c0_143 = arith.constant 0 : index
    %569 = vector.load %arg11[%c1_141, %c0_142, %c0_143] : memref<2x8x32xf32, #tpu.memory_space<vmem>>, vector<1x8x32xf32>
    %570 = vector.shape_cast %569 : vector<1x8x32xf32> to vector<8x32xf32>
    %571 = vector.shape_cast %565 : vector<8x32xf32> to vector<1x8x32xf32>
    tpu.vector_store %arg11[%c1_141, %c0_142, %c0_143], %571 {strides = array<i32>} : memref<2x8x32xf32, #tpu.memory_space<vmem>>, vector<1x8x32xf32>,
    %c1_144 = arith.constant 1 : index
    %c0_145 = arith.constant 0 : index
    %c0_146 = arith.constant 0 : index
    %572 = vector.load %arg12[%c1_144, %c0_145, %c0_146] : memref<2x8x32xf32, #tpu.memory_space<vmem>>, vector<1x8x32xf32>
    %573 = vector.shape_cast %572 : vector<1x8x32xf32> to vector<8x32xf32>
    %574 = vector.shape_cast %563 : vector<8x32xf32> to vector<1x8x32xf32>
    tpu.vector_store %arg12[%c1_144, %c0_145, %c0_146], %574 {strides = array<i32>} : memref<2x8x32xf32, #tpu.memory_space<vmem>>, vector<1x8x32xf32>,
    return
  }
  func.func @transform_0(%arg0: i32) -> (i32, i32, i32) {
    %c0_i32 = arith.constant 0 : i32
    %c0_i32_0 = arith.constant 0 : i32
    %c0_i32_1 = arith.constant 0 : i32
    return %c0_i32, %arg0, %c0_i32_0 : i32, i32, i32
  }
  func.func @transform_1(%arg0: i32) -> (i32, i32) {
    %c0_i32 = arith.constant 0 : i32
    %c0_i32_0 = arith.constant 0 : i32
    %c0_i32_1 = arith.constant 0 : i32
    return %c0_i32, %c0_i32_0 : i32, i32
  }
  func.func @transform_2(%arg0: i32) -> (i32, i32) {
    %c0_i32 = arith.constant 0 : i32
    %c0_i32_0 = arith.constant 0 : i32
    %c0_i32_1 = arith.constant 0 : i32
    return %c0_i32, %c0_i32_0 : i32, i32
  }
  func.func @transform_3(%arg0: i32) -> (i32, i32) {
    %c0_i32 = arith.constant 0 : i32
    %c0_i32_0 = arith.constant 0 : i32
    %c0_i32_1 = arith.constant 0 : i32
    return %c0_i32, %c0_i32_0 : i32, i32
  }
  func.func @transform_4(%arg0: i32) -> (i32, i32) {
    %c0_i32 = arith.constant 0 : i32
    %c0_i32_0 = arith.constant 0 : i32
    %c0_i32_1 = arith.constant 0 : i32
    return %c0_i32, %c0_i32_0 : i32, i32
  }
  func.func @transform_5(%arg0: i32) -> (i32, i32) {
    %c0_i32 = arith.constant 0 : i32
    %c0_i32_0 = arith.constant 0 : i32
    %c0_i32_1 = arith.constant 0 : i32
    return %c0_i32, %c0_i32_0 : i32, i32
  }
  func.func @transform_6(%arg0: i32) -> (i32, i32) {
    %c0_i32 = arith.constant 0 : i32
    %c0_i32_0 = arith.constant 0 : i32
    %c0_i32_1 = arith.constant 0 : i32
    return %c0_i32, %c0_i32_0 : i32, i32
  }
  func.func @transform_7(%arg0: i32) -> (i32, i32, i32) {
    %c0_i32 = arith.constant 0 : i32
    %c0_i32_0 = arith.constant 0 : i32
    %c0_i32_1 = arith.constant 0 : i32
    return %c0_i32, %arg0, %c0_i32_0 : i32, i32, i32
  }
  func.func @transform_8(%arg0: i32) -> (i32, i32, i32) {
    %c0_i32 = arith.constant 0 : i32
    %c0_i32_0 = arith.constant 0 : i32
    %c0_i32_1 = arith.constant 0 : i32
    return %c0_i32, %arg0, %c0_i32_0 : i32, i32, i32
  }
  func.func @transform_9(%arg0: i32) -> (i32, i32, i32) {
    %c0_i32 = arith.constant 0 : i32
    %c0_i32_0 = arith.constant 0 : i32
    %c0_i32_1 = arith.constant 0 : i32
    return %c0_i32, %arg0, %c0_i32_0 : i32, i32, i32
  }
  func.func @transform_10(%arg0: i32) -> (i32, i32, i32) {
    %c0_i32 = arith.constant 0 : i32
    %c0_i32_0 = arith.constant 0 : i32
    %c0_i32_1 = arith.constant 0 : i32
    return %c0_i32, %arg0, %c0_i32_0 : i32, i32, i32
  }
  func.func @transform_11(%arg0: i32) -> (i32, i32, i32) {
    %c0_i32 = arith.constant 0 : i32
    %c0_i32_0 = arith.constant 0 : i32
    %c0_i32_1 = arith.constant 0 : i32
    return %c0_i32, %arg0, %c0_i32_0 : i32, i32, i32
  }
}

</mosaic_0001>

<llo_original>
// kernel: tpu_custom_call.1
$region0: #{tpu_custom_call.1}
  #allocation0 [shape = 'u32[]', space=smem, size = 0x4, offset = 0x4, fixed_abs, tag = 'smem constant byte address 0x4 - core index']
  #allocation1 [shape = 'u32[72,128]{1,0:T(1,128)}', space=vmem, size = 0x9000, scoped, tag = 'internal scratch']
  #allocation2 [shape = 'bf16[8,8,32]{2,1,0:T(8,128)(2,1)}', space=vmem, size = 0x4000, scoped, tag = 'scratch operand']
  %s0 = inlined_call_operand.hbm [shape: f32[8,8,32], index: 0, kind: input, shape index: {}]
  %s1 = inlined_call_operand.hbm [shape: bf16[32,128], index: 1, kind: input, shape index: {}]
  %s2 = inlined_call_operand.hbm [shape: bf16[32,128], index: 2, kind: input, shape index: {}]
  %s3 = inlined_call_operand.vmem [shape: f32[1,128], index: 3, kind: input, shape index: {}]
  %s4 = inlined_call_operand.hbm [shape: bf16[32,128], index: 4, kind: input, shape index: {}]
  %s5 = inlined_call_operand.hbm [shape: bf16[32,128], index: 5, kind: input, shape index: {}]
  %s6 = inlined_call_operand.vmem [shape: f32[1,128], index: 6, kind: input, shape index: {}]
  %s7 = inlined_call_operand.hbm [shape: f32[2,8,32], index: 7, kind: input, shape index: {}]
  %s8 = inlined_call_operand.hbm [shape: f32[2,8,32], index: 8, kind: input, shape index: {}]
  %s9 = inlined_call_operand.hbm [shape: f32[8,8,32], index: 9, kind: output, shape index: {0}]
  %s10 = inlined_call_operand.hbm [shape: f32[2,8,32], index: 10, kind: output, shape index: {1}]
  %s11 = inlined_call_operand.hbm [shape: f32[2,8,32], index: 11, kind: output, shape index: {2}]
  %12 = xla_tuple %s9, %s10, %s11
  %s13 = sld [smem:[#allocation0]]
  $region90: #{tpu_custom_call.1} parent=0
    _
  %s15 = ssub.s32 1, %s13
  %s16 = scalar_select 0, %s15, %s13
  $region1: #{tpu_custom_call.1} parent=0
    #allocation3 [shape = 'u8[32768]{0}', space=vmem, size = 0x8000, scoped, tag = 'input window, operand 0, single buffered']
    #allocation4 [shape = 's32[1]{0}', space=sflag, size = 0x4, scoped, tag = 'scoped memory for tpu_custom_call.1']
    #allocation5 [shape = 's32[1]{0}', space=sflag, size = 0x4, scoped, tag = 'scoped memory for tpu_custom_call.1']
    #allocation6 [shape = 'u8[8192]{0}', space=vmem, size = 0x2000, scoped, tag = 'input window, operand 1, single buffered']
    #allocation7 [shape = 's32[1]{0}', space=sflag, size = 0x4, scoped, tag = 'scoped memory for tpu_custom_call.1']
    #allocation8 [shape = 'u8[8192]{0}', space=vmem, size = 0x2000, scoped, tag = 'input window, operand 2, single buffered']
    #allocation9 [shape = 'u8[8192]{0}', space=vmem, size = 0x2000, scoped, tag = 'input window, operand 4, single buffered']
    #allocation10 [shape = 's32[1]{0}', space=sflag, size = 0x4, scoped, tag = 'scoped memory for tpu_custom_call.1']
    #allocation11 [shape = 'u8[8192]{0}', space=vmem, size = 0x2000, scoped, tag = 'input window, operand 5, single buffered']
    #allocation12 [shape = 'u8[8192]{0}', space=vmem, size = 0x2000, scoped, tag = 'input window, operand 7, single buffered']
    #allocation13 [shape = 's32[1]{0}', space=sflag, size = 0x4, scoped, tag = 'scoped memory for tpu_custom_call.1']
    #allocation14 [shape = 'u8[8192]{0}', space=vmem, size = 0x2000, scoped, tag = 'input window, operand 8, single buffered']
    #allocation15 [shape = 'u8[32768]{0}', space=vmem, size = 0x8000, scoped, tag = 'output window, operand 0, single buffered']
    #allocation16 [shape = 'u8[8192]{0}', space=vmem, size = 0x2000, scoped, tag = 'output window, operand 1, single buffered']
    #allocation17 [shape = 's32[1]{0}', space=sflag, size = 0x4, scoped, tag = 'scoped memory for tpu_custom_call.1']
    #allocation18 [shape = 'u8[8192]{0}', space=vmem, size = 0x2000, scoped, tag = 'output window, operand 2, single buffered']
    %17 = vsyncpa [#allocation4], 0
    %18 = vsyncpa [#allocation7], 0
    %19 = vsyncpa [#allocation10], 0
    %20 = vsyncpa [#allocation13], 0
    %21 = vsyncpa [#allocation5], 0
    %22 = vsyncpa [#allocation17], 0
    // Predicated region
    $region2: #{tpu_custom_call.1} parent=1 // pred_check
      _
    $region3: #{tpu_custom_call.1} parent=1 // pred_check_branch
      %24 = sbr.rel (0) target = $region5
    $region4: #{tpu_custom_call.1} parent=1 // pred_region
      %26 = vsyncadd [#allocation4], 0
      %s27 = sshll.u32 %s0, 4
      %s28 = int_to_ptr.hbm [resolvable:$true] %s27
      %s29 = sshll.u32 [#allocation3], 4
      %s30 = int_to_ptr.vmem [resolvable:$true] %s29
      %35 = dma.hbm_to_vmem [thread:$0]  %s28, 1024, %s30, [#allocation4], 128, 128, 8
    $region5: #{tpu_custom_call.1} parent=1 // pred_fallthru
      _
    // Predicated region
    $region6: #{tpu_custom_call.1} parent=1 // pred_check
      _
    $region7: #{tpu_custom_call.1} parent=1 // pred_check_branch
      %37 = sbr.rel (0) target = $region9
    $region8: #{tpu_custom_call.1} parent=1 // pred_region
      %39 = vsyncadd [#allocation7], 0
      %s40 = sshll.u32 %s1, 4
      %s41 = int_to_ptr.hbm [resolvable:$true] %s40
      %s42 = sshll.u32 [#allocation6], 4
      %s43 = int_to_ptr.vmem [resolvable:$true] %s42
      %48 = dma.hbm_to_vmem [thread:$0]  %s41, 256, %s43, [#allocation7], 64, 64, 4
    $region9: #{tpu_custom_call.1} parent=1 // pred_fallthru
      _
    // Predicated region
    $region10: #{tpu_custom_call.1} parent=1 // pred_check
      _
    $region11: #{tpu_custom_call.1} parent=1 // pred_check_branch
      %50 = sbr.rel (0) target = $region13
    $region12: #{tpu_custom_call.1} parent=1 // pred_region
      %52 = vsyncadd [#allocation7], 0
      %s53 = sshll.u32 %s2, 4
      %s54 = int_to_ptr.hbm [resolvable:$true] %s53
      %s55 = sshll.u32 [#allocation8], 4
      %s56 = int_to_ptr.vmem [resolvable:$true] %s55
      %61 = dma.hbm_to_vmem [thread:$0]  %s54, 256, %s56, [#allocation7], 64, 64, 4
    $region13: #{tpu_custom_call.1} parent=1 // pred_fallthru
      _
    // Predicated region
    $region14: #{tpu_custom_call.1} parent=1 // pred_check
      _
    $region15: #{tpu_custom_call.1} parent=1 // pred_check_branch
      %63 = sbr.rel (0) target = $region17
    $region16: #{tpu_custom_call.1} parent=1 // pred_region
      _
    $region17: #{tpu_custom_call.1} parent=1 // pred_fallthru
      _
    // Predicated region
    $region18: #{tpu_custom_call.1} parent=1 // pred_check
      _
    $region19: #{tpu_custom_call.1} parent=1 // pred_check_branch
      %65 = sbr.rel (0) target = $region21
    $region20: #{tpu_custom_call.1} parent=1 // pred_region
      %67 = vsyncadd [#allocation10], 0
      %s68 = sshll.u32 %s4, 4
      %s69 = int_to_ptr.hbm [resolvable:$true] %s68
      %s70 = sshll.u32 [#allocation9], 4
      %s71 = int_to_ptr.vmem [resolvable:$true] %s70
      %76 = dma.hbm_to_vmem [thread:$0]  %s69, 256, %s71, [#allocation10], 64, 64, 4
    $region21: #{tpu_custom_call.1} parent=1 // pred_fallthru
      _
    // Predicated region
    $region22: #{tpu_custom_call.1} parent=1 // pred_check
      _
    $region23: #{tpu_custom_call.1} parent=1 // pred_check_branch
      %78 = sbr.rel (0) target = $region25
    $region24: #{tpu_custom_call.1} parent=1 // pred_region
      %80 = vsyncadd [#allocation10], 0
      %s81 = sshll.u32 %s5, 4
      %s82 = int_to_ptr.hbm [resolvable:$true] %s81
      %s83 = sshll.u32 [#allocation11], 4
      %s84 = int_to_ptr.vmem [resolvable:$true] %s83
      %89 = dma.hbm_to_vmem [thread:$0]  %s82, 256, %s84, [#allocation10], 64, 64, 4
    $region25: #{tpu_custom_call.1} parent=1 // pred_fallthru
      _
    // Predicated region
    $region26: #{tpu_custom_call.1} parent=1 // pred_check
      _
    $region27: #{tpu_custom_call.1} parent=1 // pred_check_branch
      %91 = sbr.rel (0) target = $region29
    $region28: #{tpu_custom_call.1} parent=1 // pred_region
      _
    $region29: #{tpu_custom_call.1} parent=1 // pred_fallthru
      _
    // Predicated region
    $region30: #{tpu_custom_call.1} parent=1 // pred_check
      _
    $region31: #{tpu_custom_call.1} parent=1 // pred_check_branch
      %93 = sbr.rel (0) target = $region33
    $region32: #{tpu_custom_call.1} parent=1 // pred_region
      %95 = vsyncadd [#allocation13], 0
      %s96 = sshll.u32 %s7, 4
      %s97 = int_to_ptr.hbm [resolvable:$true] %s96
      %s98 = sshll.u32 [#allocation12], 4
      %s99 = int_to_ptr.vmem [resolvable:$true] %s98
      %104 = dma.hbm_to_vmem [thread:$0]  %s97, 256, %s99, [#allocation13], 128, 128, 8
    $region33: #{tpu_custom_call.1} parent=1 // pred_fallthru
      _
    // Predicated region
    $region34: #{tpu_custom_call.1} parent=1 // pred_check
      _
    $region35: #{tpu_custom_call.1} parent=1 // pred_check_branch
      %106 = sbr.rel (0) target = $region37
    $region36: #{tpu_custom_call.1} parent=1 // pred_region
      %108 = vsyncadd [#allocation13], 0
      %s109 = sshll.u32 %s8, 4
      %s110 = int_to_ptr.hbm [resolvable:$true] %s109
      %s111 = sshll.u32 [#allocation14], 4
      %s112 = int_to_ptr.vmem [resolvable:$true] %s111
      %117 = dma.hbm_to_vmem [thread:$0]  %s110, 256, %s112, [#allocation13], 128, 128, 8
    $region37: #{tpu_custom_call.1} parent=1 // pred_fallthru
      _
    // Predicated region
    $region38: #{tpu_custom_call.1} parent=1 // pred_check
      _
    $region39: #{tpu_custom_call.1} parent=1 // pred_check_branch
      %119 = sbr.rel (0) target = $region41
    $region40: #{tpu_custom_call.1} parent=1 // pred_region
      %121 = dma.done [#allocation4], 1024
    $region41: #{tpu_custom_call.1} parent=1 // pred_fallthru
      _
    // Predicated region
    $region42: #{tpu_custom_call.1} parent=1 // pred_check
      _
    $region43: #{tpu_custom_call.1} parent=1 // pred_check_branch
      %123 = sbr.rel (0) target = $region45
    $region44: #{tpu_custom_call.1} parent=1 // pred_region
      %125 = dma.done [#allocation7], 256
    $region45: #{tpu_custom_call.1} parent=1 // pred_fallthru
      _
    // Predicated region
    $region46: #{tpu_custom_call.1} parent=1 // pred_check
      _
    $region47: #{tpu_custom_call.1} parent=1 // pred_check_branch
      %127 = sbr.rel (0) target = $region49
    $region48: #{tpu_custom_call.1} parent=1 // pred_region
      %129 = dma.done [#allocation7], 256
    $region49: #{tpu_custom_call.1} parent=1 // pred_fallthru
      _
    // Predicated region
    $region50: #{tpu_custom_call.1} parent=1 // pred_check
      _
    $region51: #{tpu_custom_call.1} parent=1 // pred_check_branch
      %131 = sbr.rel (0) target = $region53
    $region52: #{tpu_custom_call.1} parent=1 // pred_region
      %133 = dma.done [#allocation10], 256
    $region53: #{tpu_custom_call.1} parent=1 // pred_fallthru
      _
    // Predicated region
    $region54: #{tpu_custom_call.1} parent=1 // pred_check
      _
    $region55: #{tpu_custom_call.1} parent=1 // pred_check_branch
      %135 = sbr.rel (0) target = $region57
    $region56: #{tpu_custom_call.1} parent=1 // pred_region
      %137 = dma.done [#allocation10], 256
    $region57: #{tpu_custom_call.1} parent=1 // pred_fallthru
      _
    // Predicated region
    $region58: #{tpu_custom_call.1} parent=1 // pred_check
      _
    $region59: #{tpu_custom_call.1} parent=1 // pred_check_branch
      %139 = sbr.rel (0) target = $region61
    $region60: #{tpu_custom_call.1} parent=1 // pred_region
      %141 = dma.done [#allocation13], 256
    $region61: #{tpu_custom_call.1} parent=1 // pred_fallthru
      _
    // Predicated region
    $region62: #{tpu_custom_call.1} parent=1 // pred_check
      _
    $region63: #{tpu_custom_call.1} parent=1 // pred_check_branch
      %143 = sbr.rel (0) target = $region65
    $region64: #{tpu_custom_call.1} parent=1 // pred_region
      %145 = dma.done [#allocation13], 256
    $region65: #{tpu_custom_call.1} parent=1 // pred_fallthru
      _
    %v147 = vld [vmem:[#allocation6] sm:$0xf]
    %v148 = vld [vmem:[#allocation6 + $0x4] sm:$0xf]
    %v149 = vld [vmem:[#allocation6 + $0x8] sm:$0xf]
    %v150 = vld [vmem:[#allocation6 + $0xc] sm:$0xf]
    %v151 = vld [vmem:[#allocation8] sm:$0xf]
    %v152 = vld [vmem:[#allocation8 + $0x4] sm:$0xf]
    %v153 = vld [vmem:[#allocation8 + $0x8] sm:$0xf]
    %v154 = vld [vmem:[#allocation8 + $0xc] sm:$0xf]
    %v155 = vld [vmem:[%s3] sm:$0x1]
    %v156 = vld [vmem:[#allocation3] sm:$0xff]
    %v157 = vld [vmem:[#allocation3 + $0x8] sm:$0xff]
    %v158 = vld [vmem:[#allocation3 + $0x10] sm:$0xff]
    %v159 = vld [vmem:[#allocation3 + $0x18] sm:$0xff]
    %v160 = vld [vmem:[#allocation3 + $0x20] sm:$0xff]
    %v161 = vld [vmem:[#allocation3 + $0x28] sm:$0xff]
    %v162 = vld [vmem:[#allocation3 + $0x30] sm:$0xff]
    %v163 = vld [vmem:[#allocation3 + $0x38] sm:$0xff]
    %v164 = vpack.c.bf16 %v156, %v156
    %v165 = vpack.c.bf16 %v157, %v157
    %v166 = vpack.c.bf16 %v158, %v158
    %v167 = vpack.c.bf16 %v159, %v159
    %v168 = vpack.c.bf16 %v160, %v160
    %v169 = vpack.c.bf16 %v161, %v161
    %v170 = vpack.c.bf16 %v162, %v162
    %v171 = vpack.c.bf16 %v163, %v163
    %v173 = vperm.slane %v155, 0
    %v183 = vunpack.c.l.b16 %v164
    %v184 = vunpack.c.l.b16 %v165
    %v185 = vunpack.c.l.b16 %v166
    %v186 = vunpack.c.l.b16 %v167
    %v187 = vunpack.c.l.b16 %v168
    %v188 = vunpack.c.l.b16 %v169
    %v189 = vunpack.c.l.b16 %v170
    %v190 = vunpack.c.l.b16 %v171
    %v191 = vpack.c.b16 %v184, %v183
    %v192 = vpack.c.b16 %v186, %v185
    %v193 = vpack.c.b16 %v188, %v187
    %v194 = vpack.c.b16 %v190, %v189
    %v199 = vunpack.c.l.b16 %v147
    %v200 = vunpack.c.l.b16 %v148
    %v201 = vunpack.c.l.b16 %v149
    %v202 = vunpack.c.l.b16 %v150
    %v203 = vpack.c.b16 %v200, %v199
    %v204 = vpack.c.b16 %v202, %v201
    %vm207 = vcmask 261120
    %v209 = vsel %vm207, %v191, 0
    %v212 = vsel %vm207, %v192, 0
    %v215 = vsel %vm207, %v193, 0
    %v218 = vsel %vm207, %v194, 0
    %220 = vmatpush.bf16.msra.mxu0 0
    %221 = vmatpush.bf16.msra.mxu0 0
    %222 = vmatpush.bf16.msra.mxu0 0
    %223 = vmatpush.bf16.msra.mxu0 0
    %224 = vmatpush.bf16.msra.mxu0 0
    %225 = vmatpush.bf16.msra.mxu0 0
    %226 = vmatpush.bf16.msra.mxu0 %v204
    %227 = vmatpush.bf16.msra.mxu0 %v203
    %228 = vmatmul.bf16.gmra.mxu0 %v209
    %v229 = vpop.f32.mrf.mxu0
    %v230 = vadd.f32 %v173, %v229
    %v231 = vpop.f32.mrf.mxu0
    %v232 = vadd.f32 %v173, %v231
    %233 = vmatmul.bf16.gmra.mxu0 %v212
    %v234 = vpop.f32.mrf.mxu0
    %v235 = vadd.f32 %v173, %v234
    %v236 = vpop.f32.mrf.mxu0
    %v237 = vadd.f32 %v173, %v236
    %238 = vmatmul.bf16.gmra.mxu0 %v215
    %v239 = vpop.f32.mrf.mxu0
    %v240 = vadd.f32 %v173, %v239
    %v241 = vpop.f32.mrf.mxu0
    %v242 = vadd.f32 %v173, %v241
    %243 = vmatmul.bf16.gmra.mxu0 %v218
    %v244 = vpop.f32.mrf.mxu0
    %v245 = vadd.f32 %v173, %v244
    %v246 = vpop.f32.mrf.mxu0
    %v247 = vadd.f32 %v173, %v246
    %248 = vdwg.mxu0
    %v249 = vld [vmem:[#allocation12] sm:$0xff]
    %v250 = vld [vmem:[#allocation14] sm:$0xff]
    %v251 = vpack.c.bf16 %v249, %v249
    %v256 = vunpack.c.l.b16 %v151
    %v257 = vunpack.c.l.b16 %v152
    %v258 = vunpack.c.l.b16 %v153
    %v259 = vunpack.c.l.b16 %v154
    %v260 = vpack.c.b16 %v257, %v256
    %v261 = vpack.c.b16 %v259, %v258
    %v265 = vsel %vm207, %v251, 0
    %267 = vmatpush.bf16.msra.mxu0 0
    %268 = vmatpush.bf16.msra.mxu0 0
    %269 = vmatpush.bf16.msra.mxu0 0
    %270 = vmatpush.bf16.msra.mxu0 0
    %271 = vmatpush.bf16.msra.mxu0 0
    %272 = vmatpush.bf16.msra.mxu0 0
    %273 = vmatpush.bf16.msra.mxu0 %v261
    %274 = vmatpush.bf16.msra.mxu0 %v260
    %275 = vmatmul.bf16.gmra.mxu0 %v265
    %v276 = vpop.f32.mrf.mxu0
    %v277 = vadd.f32 0.0, %v276
    %v278 = vpop.f32.mrf.mxu0
    %279 = vdwg.mxu0
    %v280 = vadd.f32 %v230, %v277
    %v281 = vxor.u32 %v280, 2147483648
    %v282 = vmul.f32 %v281, 1.442695
    %v283 = vpow.pop %v282
    %v284 = vadd.f32 %v283, 1.0
    %v285 = vrcp.pop %v284
    %v286 = vmul.f32 %v284, %v285
    %v287 = vsub.f32 1.0, %v286
    %v288 = vmul.f32 %v285, %v287
    %v289 = vadd.f32 %v285, %v288
    %vm290 = vweird.f32 %v284
    %vm291 = vweird.f32 %v285
    %vm292 = vmor %vm290, %vm291
    %v293 = vsel %vm292, %v285, %v289
    %v294 = vand.u32 2147483647, %v284
    %vm295 = vcmp.eq.f32.partialorder %v294, 8.507059e+37
    %v296 = vand.u32 %v284, 2147483648
    %v297 = vor.u32 1.1754944e-38, %v296
    %v298 = vsel %vm295, %v297, %v293
    %v299 = vmul.f32 1.0, %v298
    %v300 = vtanh.pop %v280
    %302 = vrot.lane.b32.xlu0 %v250, 32
    %v303 = vpop.permute.xlu0 %302
    %v305 = vmul.f32 %v299, %v303
    %307 = vrot.lane.b32.xlu0 %v300, 64
    %v308 = vpop.permute.xlu0 %307
    %v310 = vmul.f32 %v299, %v308
    %312 = vrot.lane.b32.xlu0 %v310, 32
    %v313 = vpop.permute.xlu0 %312
    %v315 = vadd.f32 %v305, %v313
    %v316 = vtanh.pop %v315
    %318 = vrot.lane.b32.xlu0 %v316, 64
    %v319 = vpop.permute.xlu0 %318
    %v321 = vmul.f32 %v299, %v319
    %v322 = vpack.c.bf16 %v321, %v321
    %324 = vrot.lane.b32.xlu0 %v322, 32
    %v325 = vpop.permute.xlu0 %324
    %vm327 = vcmask 257024
    %328 = vst.msk [vmem:[#allocation2] sm:$0xf] %vm327, %v325
    %v329 = vunpack.c.l.b16 %v322
    %v330 = vpack.c.b16 %v329, %v329
    %331 = vrot.lane.b32.xlu0 %v330, 32
    %v332 = vpop.permute.xlu0 %331
    %v334 = vsel %vm207, %v332, 0
    %336 = vmatpush.bf16.msra.mxu0 0
    %337 = vmatpush.bf16.msra.mxu0 0
    %338 = vmatpush.bf16.msra.mxu0 0
    %339 = vmatpush.bf16.msra.mxu0 0
    %340 = vmatpush.bf16.msra.mxu0 0
    %341 = vmatpush.bf16.msra.mxu0 0
    %342 = vmatpush.bf16.msra.mxu0 %v261
    %343 = vmatpush.bf16.msra.mxu0 %v260
    %344 = vmatmul.bf16.gmra.mxu0 %v334
    %v345 = vpop.f32.mrf.mxu0
    %v346 = vadd.f32 0.0, %v345
    %v347 = vpop.f32.mrf.mxu0
    %348 = vdwg.mxu0
    %v349 = vadd.f32 %v232, %v346
    %v350 = vxor.u32 %v349, 2147483648
    %v351 = vmul.f32 %v350, 1.442695
    %v352 = vpow.pop %v351
    %v353 = vadd.f32 %v352, 1.0
    %v354 = vrcp.pop %v353
    %v355 = vmul.f32 %v353, %v354
    %v356 = vsub.f32 1.0, %v355
    %v357 = vmul.f32 %v354, %v356
    %v358 = vadd.f32 %v354, %v357
    %vm359 = vweird.f32 %v353
    %vm360 = vweird.f32 %v354
    %vm361 = vmor %vm359, %vm360
    %v362 = vsel %vm361, %v354, %v358
    %v363 = vand.u32 2147483647, %v353
    %vm364 = vcmp.eq.f32.partialorder %v363, 8.507059e+37
    %v365 = vand.u32 %v353, 2147483648
    %v366 = vor.u32 1.1754944e-38, %v365
    %v367 = vsel %vm364, %v366, %v362
    %v368 = vmul.f32 1.0, %v367
    %v369 = vtanh.pop %v349
    %v370 = vmul.f32 %v368, %v315
    %372 = vrot.lane.b32.xlu0 %v369, 64
    %v373 = vpop.permute.xlu0 %372
    %v375 = vmul.f32 %v368, %v373
    %377 = vrot.lane.b32.xlu0 %v375, 32
    %v378 = vpop.permute.xlu0 %377
    %v380 = vadd.f32 %v370, %v378
    %v381 = vtanh.pop %v380
    %383 = vrot.lane.b32.xlu0 %v381, 64
    %v384 = vpop.permute.xlu0 %383
    %v386 = vmul.f32 %v368, %v384
    %v387 = vpack.c.bf16 %v386, %v386
    %389 = vrot.lane.b32.xlu0 %v387, 32
    %v390 = vpop.permute.xlu0 %389
    %s392 = scalar_lea.vmem [#allocation2], 4
    %393 = vst.msk [vmem:[%s392] sm:$0xf] %vm327, %v390
    %v394 = vunpack.c.l.b16 %v387
    %v395 = vpack.c.b16 %v394, %v394
    %396 = vrot.lane.b32.xlu0 %v395, 32
    %v397 = vpop.permute.xlu0 %396
    %v399 = vsel %vm207, %v397, 0
    %401 = vmatpush.bf16.msra.mxu0 0
    %402 = vmatpush.bf16.msra.mxu0 0
    %403 = vmatpush.bf16.msra.mxu0 0
    %404 = vmatpush.bf16.msra.mxu0 0
    %405 = vmatpush.bf16.msra.mxu0 0
    %406 = vmatpush.bf16.msra.mxu0 0
    %407 = vmatpush.bf16.msra.mxu0 %v261
    %408 = vmatpush.bf16.msra.mxu0 %v260
    %409 = vmatmul.bf16.gmra.mxu0 %v399
    %v410 = vpop.f32.mrf.mxu0
    %v411 = vadd.f32 0.0, %v410
    %v412 = vpop.f32.mrf.mxu0
    %413 = vdwg.mxu0
    %v414 = vadd.f32 %v235, %v411
    %v415 = vxor.u32 %v414, 2147483648
    %v416 = vmul.f32 %v415, 1.442695
    %v417 = vpow.pop %v416
    %v418 = vadd.f32 %v417, 1.0
    %v419 = vrcp.pop %v418
    %v420 = vmul.f32 %v418, %v419
    %v421 = vsub.f32 1.0, %v420
    %v422 = vmul.f32 %v419, %v421
    %v423 = vadd.f32 %v419, %v422
    %vm424 = vweird.f32 %v418
    %vm425 = vweird.f32 %v419
    %vm426 = vmor %vm424, %vm425
    %v427 = vsel %vm426, %v419, %v423
    %v428 = vand.u32 2147483647, %v418
    %vm429 = vcmp.eq.f32.partialorder %v428, 8.507059e+37
    %v430 = vand.u32 %v418, 2147483648
    %v431 = vor.u32 1.1754944e-38, %v430
    %v432 = vsel %vm429, %v431, %v427
    %v433 = vmul.f32 1.0, %v432
    %v434 = vtanh.pop %v414
    %v435 = vmul.f32 %v433, %v380
    %437 = vrot.lane.b32.xlu0 %v434, 64
    %v438 = vpop.permute.xlu0 %437
    %v440 = vmul.f32 %v433, %v438
    %442 = vrot.lane.b32.xlu0 %v440, 32
    %v443 = vpop.permute.xlu0 %442
    %v445 = vadd.f32 %v435, %v443
    %v446 = vtanh.pop %v445
    %448 = vrot.lane.b32.xlu0 %v446, 64
    %v449 = vpop.permute.xlu0 %448
    %v451 = vmul.f32 %v433, %v449
    %v452 = vpack.c.bf16 %v451, %v451
    %454 = vrot.lane.b32.xlu0 %v452, 32
    %v455 = vpop.permute.xlu0 %454
    %s457 = scalar_lea.vmem [#allocation2], 8
    %458 = vst.msk [vmem:[%s457] sm:$0xf] %vm327, %v455
    %v459 = vunpack.c.l.b16 %v452
    %v460 = vpack.c.b16 %v459, %v459
    %461 = vrot.lane.b32.xlu0 %v460, 32
    %v462 = vpop.permute.xlu0 %461
    %v464 = vsel %vm207, %v462, 0
    %466 = vmatpush.bf16.msra.mxu0 0
    %467 = vmatpush.bf16.msra.mxu0 0
    %468 = vmatpush.bf16.msra.mxu0 0
    %469 = vmatpush.bf16.msra.mxu0 0
    %470 = vmatpush.bf16.msra.mxu0 0
    %471 = vmatpush.bf16.msra.mxu0 0
    %472 = vmatpush.bf16.msra.mxu0 %v261
    %473 = vmatpush.bf16.msra.mxu0 %v260
    %474 = vmatmul.bf16.gmra.mxu0 %v464
    %v475 = vpop.f32.mrf.mxu0
    %v476 = vadd.f32 0.0, %v475
    %v477 = vpop.f32.mrf.mxu0
    %478 = vdwg.mxu0
    %v479 = vadd.f32 %v237, %v476
    %v480 = vxor.u32 %v479, 2147483648
    %v481 = vmul.f32 %v480, 1.442695
    %v482 = vpow.pop %v481
    %v483 = vadd.f32 %v482, 1.0
    %v484 = vrcp.pop %v483
    %v485 = vmul.f32 %v483, %v484
    %v486 = vsub.f32 1.0, %v485
    %v487 = vmul.f32 %v484, %v486
    %v488 = vadd.f32 %v484, %v487
    %vm489 = vweird.f32 %v483
    %vm490 = vweird.f32 %v484
    %vm491 = vmor %vm489, %vm490
    %v492 = vsel %vm491, %v484, %v488
    %v493 = vand.u32 2147483647, %v483
    %vm494 = vcmp.eq.f32.partialorder %v493, 8.507059e+37
    %v495 = vand.u32 %v483, 2147483648
    %v496 = vor.u32 1.1754944e-38, %v495
    %v497 = vsel %vm494, %v496, %v492
    %v498 = vmul.f32 1.0, %v497
    %v499 = vtanh.pop %v479
    %v500 = vmul.f32 %v498, %v445
    %502 = vrot.lane.b32.xlu0 %v499, 64
    %v503 = vpop.permute.xlu0 %502
    %v505 = vmul.f32 %v498, %v503
    %507 = vrot.lane.b32.xlu0 %v505, 32
    %v508 = vpop.permute.xlu0 %507
    %v510 = vadd.f32 %v500, %v508
    %v511 = vtanh.pop %v510
    %513 = vrot.lane.b32.xlu0 %v511, 64
    %v514 = vpop.permute.xlu0 %513
    %v516 = vmul.f32 %v498, %v514
    %v517 = vpack.c.bf16 %v516, %v516
    %519 = vrot.lane.b32.xlu0 %v517, 32
    %v520 = vpop.permute.xlu0 %519
    %s522 = scalar_lea.vmem [#allocation2], 12
    %523 = vst.msk [vmem:[%s522] sm:$0xf] %vm327, %v520
    %v524 = vunpack.c.l.b16 %v517
    %v525 = vpack.c.b16 %v524, %v524
    %526 = vrot.lane.b32.xlu0 %v525, 32
    %v527 = vpop.permute.xlu0 %526
    %v529 = vsel %vm207, %v527, 0
    %531 = vmatpush.bf16.msra.mxu0 0
    %532 = vmatpush.bf16.msra.mxu0 0
    %533 = vmatpush.bf16.msra.mxu0 0
    %534 = vmatpush.bf16.msra.mxu0 0
    %535 = vmatpush.bf16.msra.mxu0 0
    %536 = vmatpush.bf16.msra.mxu0 0
    %537 = vmatpush.bf16.msra.mxu0 %v261
    %538 = vmatpush.bf16.msra.mxu0 %v260
    %539 = vmatmul.bf16.gmra.mxu0 %v529
    %v540 = vpop.f32.mrf.mxu0
    %v541 = vadd.f32 0.0, %v540
    %v542 = vpop.f32.mrf.mxu0
    %543 = vdwg.mxu0
    %v544 = vadd.f32 %v240, %v541
    %v545 = vxor.u32 %v544, 2147483648
    %v546 = vmul.f32 %v545, 1.442695
    %v547 = vpow.pop %v546
    %v548 = vadd.f32 %v547, 1.0
    %v549 = vrcp.pop %v548
    %v550 = vmul.f32 %v548, %v549
    %v551 = vsub.f32 1.0, %v550
    %v552 = vmul.f32 %v549, %v551
    %v553 = vadd.f32 %v549, %v552
    %vm554 = vweird.f32 %v548
    %vm555 = vweird.f32 %v549
    %vm556 = vmor %vm554, %vm555
    %v557 = vsel %vm556, %v549, %v553
    %v558 = vand.u32 2147483647, %v548
    %vm559 = vcmp.eq.f32.partialorder %v558, 8.507059e+37
    %v560 = vand.u32 %v548, 2147483648
    %v561 = vor.u32 1.1754944e-38, %v560
    %v562 = vsel %vm559, %v561, %v557
    %v563 = vmul.f32 1.0, %v562
    %v564 = vtanh.pop %v544
    %v565 = vmul.f32 %v563, %v510
    %567 = vrot.lane.b32.xlu0 %v564, 64
    %v568 = vpop.permute.xlu0 %567
    %v570 = vmul.f32 %v563, %v568
    %572 = vrot.lane.b32.xlu0 %v570, 32
    %v573 = vpop.permute.xlu0 %572
    %v575 = vadd.f32 %v565, %v573
    %v576 = vtanh.pop %v575
    %578 = vrot.lane.b32.xlu0 %v576, 64
    %v579 = vpop.permute.xlu0 %578
    %v581 = vmul.f32 %v563, %v579
    %v582 = vpack.c.bf16 %v581, %v581
    %584 = vrot.lane.b32.xlu0 %v582, 32
    %v585 = vpop.permute.xlu0 %584
    %s587 = scalar_lea.vmem [#allocation2], 16
    %588 = vst.msk [vmem:[%s587] sm:$0xf] %vm327, %v585
    %v589 = vunpack.c.l.b16 %v582
    %v590 = vpack.c.b16 %v589, %v589
    %591 = vrot.lane.b32.xlu0 %v590, 32
    %v592 = vpop.permute.xlu0 %591
    %v594 = vsel %vm207, %v592, 0
    %596 = vmatpush.bf16.msra.mxu0 0
    %597 = vmatpush.bf16.msra.mxu0 0
    %598 = vmatpush.bf16.msra.mxu0 0
    %599 = vmatpush.bf16.msra.mxu0 0
    %600 = vmatpush.bf16.msra.mxu0 0
    %601 = vmatpush.bf16.msra.mxu0 0
    %602 = vmatpush.bf16.msra.mxu0 %v261
    %603 = vmatpush.bf16.msra.mxu0 %v260
    %604 = vmatmul.bf16.gmra.mxu0 %v594
    %v605 = vpop.f32.mrf.mxu0
    %v606 = vadd.f32 0.0, %v605
    %v607 = vpop.f32.mrf.mxu0
    %608 = vdwg.mxu0
    %v609 = vadd.f32 %v242, %v606
    %v610 = vxor.u32 %v609, 2147483648
    %v611 = vmul.f32 %v610, 1.442695
    %v612 = vpow.pop %v611
    %v613 = vadd.f32 %v612, 1.0
    %v614 = vrcp.pop %v613
    %v615 = vmul.f32 %v613, %v614
    %v616 = vsub.f32 1.0, %v615
    %v617 = vmul.f32 %v614, %v616
    %v618 = vadd.f32 %v614, %v617
    %vm619 = vweird.f32 %v613
    %vm620 = vweird.f32 %v614
    %vm621 = vmor %vm619, %vm620
    %v622 = vsel %vm621, %v614, %v618
    %v623 = vand.u32 2147483647, %v613
    %vm624 = vcmp.eq.f32.partialorder %v623, 8.507059e+37
    %v625 = vand.u32 %v613, 2147483648
    %v626 = vor.u32 1.1754944e-38, %v625
    %v627 = vsel %vm624, %v626, %v622
    %v628 = vmul.f32 1.0, %v627
    %v629 = vtanh.pop %v609
    %v630 = vmul.f32 %v628, %v575
    %632 = vrot.lane.b32.xlu0 %v629, 64
    %v633 = vpop.permute.xlu0 %632
    %v635 = vmul.f32 %v628, %v633
    %637 = vrot.lane.b32.xlu0 %v635, 32
    %v638 = vpop.permute.xlu0 %637
    %v640 = vadd.f32 %v630, %v638
    %v641 = vtanh.pop %v640
    %643 = vrot.lane.b32.xlu0 %v641, 64
    %v644 = vpop.permute.xlu0 %643
    %v646 = vmul.f32 %v628, %v644
    %v647 = vpack.c.bf16 %v646, %v646
    %649 = vrot.lane.b32.xlu0 %v647, 32
    %v650 = vpop.permute.xlu0 %649
    %s652 = scalar_lea.vmem [#allocation2], 20
    %653 = vst.msk [vmem:[%s652] sm:$0xf] %vm327, %v650
    %v654 = vunpack.c.l.b16 %v647
    %v655 = vpack.c.b16 %v654, %v654
    %656 = vrot.lane.b32.xlu0 %v655, 32
    %v657 = vpop.permute.xlu0 %656
    %v659 = vsel %vm207, %v657, 0
    %661 = vmatpush.bf16.msra.mxu0 0
    %662 = vmatpush.bf16.msra.mxu0 0
    %663 = vmatpush.bf16.msra.mxu0 0
    %664 = vmatpush.bf16.msra.mxu0 0
    %665 = vmatpush.bf16.msra.mxu0 0
    %666 = vmatpush.bf16.msra.mxu0 0
    %667 = vmatpush.bf16.msra.mxu0 %v261
    %668 = vmatpush.bf16.msra.mxu0 %v260
    %669 = vmatmul.bf16.gmra.mxu0 %v659
    %v670 = vpop.f32.mrf.mxu0
    %v671 = vadd.f32 0.0, %v670
    %v672 = vpop.f32.mrf.mxu0
    %673 = vdwg.mxu0
    %v674 = vadd.f32 %v245, %v671
    %v675 = vxor.u32 %v674, 2147483648
    %v676 = vmul.f32 %v675, 1.442695
    %v677 = vpow.pop %v676
    %v678 = vadd.f32 %v677, 1.0
    %v679 = vrcp.pop %v678
    %v680 = vmul.f32 %v678, %v679
    %v681 = vsub.f32 1.0, %v680
    %v682 = vmul.f32 %v679, %v681
    %v683 = vadd.f32 %v679, %v682
    %vm684 = vweird.f32 %v678
    %vm685 = vweird.f32 %v679
    %vm686 = vmor %vm684, %vm685
    %v687 = vsel %vm686, %v679, %v683
    %v688 = vand.u32 2147483647, %v678
    %vm689 = vcmp.eq.f32.partialorder %v688, 8.507059e+37
    %v690 = vand.u32 %v678, 2147483648
    %v691 = vor.u32 1.1754944e-38, %v690
    %v692 = vsel %vm689, %v691, %v687
    %v693 = vmul.f32 1.0, %v692
    %v694 = vtanh.pop %v674
    %v695 = vmul.f32 %v693, %v640
    %697 = vrot.lane.b32.xlu0 %v694, 64
    %v698 = vpop.permute.xlu0 %697
    %v700 = vmul.f32 %v693, %v698
    %702 = vrot.lane.b32.xlu0 %v700, 32
    %v703 = vpop.permute.xlu0 %702
    %v705 = vadd.f32 %v695, %v703
    %v706 = vtanh.pop %v705
    %708 = vrot.lane.b32.xlu0 %v706, 64
    %v709 = vpop.permute.xlu0 %708
    %v711 = vmul.f32 %v693, %v709
    %v712 = vpack.c.bf16 %v711, %v711
    %714 = vrot.lane.b32.xlu0 %v712, 32
    %v715 = vpop.permute.xlu0 %714
    %s717 = scalar_lea.vmem [#allocation2], 24
    %718 = vst.msk [vmem:[%s717] sm:$0xf] %vm327, %v715
    %v719 = vunpack.c.l.b16 %v712
    %v720 = vpack.c.b16 %v719, %v719
    %721 = vrot.lane.b32.xlu0 %v720, 32
    %v722 = vpop.permute.xlu0 %721
    %v724 = vsel %vm207, %v722, 0
    %726 = vmatpush.bf16.msra.mxu0 0
    %727 = vmatpush.bf16.msra.mxu0 0
    %728 = vmatpush.bf16.msra.mxu0 0
    %729 = vmatpush.bf16.msra.mxu0 0
    %730 = vmatpush.bf16.msra.mxu0 0
    %731 = vmatpush.bf16.msra.mxu0 0
    %732 = vmatpush.bf16.msra.mxu0 %v261
    %733 = vmatpush.bf16.msra.mxu0 %v260
    %734 = vmatmul.bf16.gmra.mxu0 %v724
    %v735 = vpop.f32.mrf.mxu0
    %v736 = vadd.f32 0.0, %v735
    %v737 = vpop.f32.mrf.mxu0
    %738 = vdwg.mxu0
    %v739 = vadd.f32 %v247, %v736
    %v740 = vxor.u32 %v739, 2147483648
    %v741 = vmul.f32 %v740, 1.442695
    %v742 = vpow.pop %v741
    %v743 = vadd.f32 %v742, 1.0
    %v744 = vrcp.pop %v743
    %v745 = vmul.f32 %v743, %v744
    %v746 = vsub.f32 1.0, %v745
    %v747 = vmul.f32 %v744, %v746
    %v748 = vadd.f32 %v744, %v747
    %vm749 = vweird.f32 %v743
    %vm750 = vweird.f32 %v744
    %vm751 = vmor %vm749, %vm750
    %v752 = vsel %vm751, %v744, %v748
    %v753 = vand.u32 2147483647, %v743
    %vm754 = vcmp.eq.f32.partialorder %v753, 8.507059e+37
    %v755 = vand.u32 %v743, 2147483648
    %v756 = vor.u32 1.1754944e-38, %v755
    %v757 = vsel %vm754, %v756, %v752
    %v758 = vmul.f32 1.0, %v757
    %v759 = vtanh.pop %v739
    %v760 = vmul.f32 %v758, %v705
    %762 = vrot.lane.b32.xlu0 %v759, 64
    %v763 = vpop.permute.xlu0 %762
    %v765 = vmul.f32 %v758, %v763
    %767 = vrot.lane.b32.xlu0 %v765, 32
    %v768 = vpop.permute.xlu0 %767
    %v770 = vadd.f32 %v760, %v768
    %v771 = vtanh.pop %v770
    %773 = vrot.lane.b32.xlu0 %v771, 64
    %v774 = vpop.permute.xlu0 %773
    %v776 = vmul.f32 %v758, %v774
    %v777 = vpack.c.bf16 %v776, %v776
    %779 = vrot.lane.b32.xlu0 %v777, 32
    %v780 = vpop.permute.xlu0 %779
    %s782 = scalar_lea.vmem [#allocation2], 28
    %783 = vst.msk [vmem:[%s782] sm:$0xf] %vm327, %v780
    %785 = vrot.lane.b32.xlu0 %v776, 32
    %v786 = vpop.permute.xlu0 %785
    %788 = vst.msk [vmem:[#allocation16] sm:$0xff] %vm207, %v786
    %790 = vrot.lane.b32.xlu0 %v770, 96
    %v791 = vpop.permute.xlu0 %790
    %793 = vst.msk [vmem:[#allocation18] sm:$0xff] %vm207, %v791
    %v794 = vld [vmem:[#allocation9] sm:$0xf]
    %v795 = vld [vmem:[#allocation9 + $0x4] sm:$0xf]
    %v796 = vld [vmem:[#allocation9 + $0x8] sm:$0xf]
    %v797 = vld [vmem:[#allocation9 + $0xc] sm:$0xf]
    %v798 = vld [vmem:[#allocation11] sm:$0xf]
    %v799 = vld [vmem:[#allocation11 + $0x4] sm:$0xf]
    %v800 = vld [vmem:[#allocation11 + $0x8] sm:$0xf]
    %v801 = vld [vmem:[#allocation11 + $0xc] sm:$0xf]
    %v802 = vld [vmem:[%s6] sm:$0x1]
    %v803 = vld [vmem:[#allocation2] sm:$0xf]
    %v804 = vld [vmem:[#allocation2 + $0x4] sm:$0xf]
    %v805 = vld [vmem:[#allocation2 + $0x8] sm:$0xf]
    %v806 = vld [vmem:[#allocation2 + $0xc] sm:$0xf]
    %v807 = vld [vmem:[#allocation2 + $0x10] sm:$0xf]
    %v808 = vld [vmem:[#allocation2 + $0x14] sm:$0xf]
    %v809 = vld [vmem:[#allocation2 + $0x18] sm:$0xf]
    %v810 = vld [vmem:[#allocation2 + $0x1c] sm:$0xf]
    %v812 = vperm.slane %v802, 0
    %v822 = vunpack.c.l.b16 %v803
    %v823 = vunpack.c.l.b16 %v804
    %v824 = vunpack.c.l.b16 %v805
    %v825 = vunpack.c.l.b16 %v806
    %v826 = vunpack.c.l.b16 %v807
    %v827 = vunpack.c.l.b16 %v808
    %v828 = vunpack.c.l.b16 %v809
    %v829 = vunpack.c.l.b16 %v810
    %v830 = vpack.c.b16 %v823, %v822
    %v831 = vpack.c.b16 %v825, %v824
    %v832 = vpack.c.b16 %v827, %v826
    %v833 = vpack.c.b16 %v829, %v828
    %v838 = vunpack.c.l.b16 %v794
    %v839 = vunpack.c.l.b16 %v795
    %v840 = vunpack.c.l.b16 %v796
    %v841 = vunpack.c.l.b16 %v797
    %v842 = vpack.c.b16 %v839, %v838
    %v843 = vpack.c.b16 %v841, %v840
    %v847 = vsel %vm207, %v830, 0
    %v850 = vsel %vm207, %v831, 0
    %v853 = vsel %vm207, %v832, 0
    %v856 = vsel %vm207, %v833, 0
    %858 = vmatpush.bf16.msra.mxu0 0
    %859 = vmatpush.bf16.msra.mxu0 0
    %860 = vmatpush.bf16.msra.mxu0 0
    %861 = vmatpush.bf16.msra.mxu0 0
    %862 = vmatpush.bf16.msra.mxu0 0
    %863 = vmatpush.bf16.msra.mxu0 0
    %864 = vmatpush.bf16.msra.mxu0 %v843
    %865 = vmatpush.bf16.msra.mxu0 %v842
    %866 = vmatmul.bf16.gmra.mxu0 %v847
    %v867 = vpop.f32.mrf.mxu0
    %v868 = vadd.f32 %v812, %v867
    %v869 = vpop.f32.mrf.mxu0
    %v870 = vadd.f32 %v812, %v869
    %871 = vmatmul.bf16.gmra.mxu0 %v850
    %v872 = vpop.f32.mrf.mxu0
    %v873 = vadd.f32 %v812, %v872
    %v874 = vpop.f32.mrf.mxu0
    %v875 = vadd.f32 %v812, %v874
    %876 = vmatmul.bf16.gmra.mxu0 %v853
    %v877 = vpop.f32.mrf.mxu0
    %v878 = vadd.f32 %v812, %v877
    %v879 = vpop.f32.mrf.mxu0
    %v880 = vadd.f32 %v812, %v879
    %881 = vmatmul.bf16.gmra.mxu0 %v856
    %v882 = vpop.f32.mrf.mxu0
    %v883 = vadd.f32 %v812, %v882
    %v884 = vpop.f32.mrf.mxu0
    %v885 = vadd.f32 %v812, %v884
    %886 = vdwg.mxu0
    %s887 = scalar_lea.vmem [#allocation12], 8
    %v888 = vld [vmem:[%s887] sm:$0xff]
    %s889 = scalar_lea.vmem [#allocation14], 8
    %v890 = vld [vmem:[%s889] sm:$0xff]
    %v891 = vpack.c.bf16 %v888, %v888
    %v896 = vunpack.c.l.b16 %v798
    %v897 = vunpack.c.l.b16 %v799
    %v898 = vunpack.c.l.b16 %v800
    %v899 = vunpack.c.l.b16 %v801
    %v900 = vpack.c.b16 %v897, %v896
    %v901 = vpack.c.b16 %v899, %v898
    %v905 = vsel %vm207, %v891, 0
    %907 = vmatpush.bf16.msra.mxu0 0
    %908 = vmatpush.bf16.msra.mxu0 0
    %909 = vmatpush.bf16.msra.mxu0 0
    %910 = vmatpush.bf16.msra.mxu0 0
    %911 = vmatpush.bf16.msra.mxu0 0
    %912 = vmatpush.bf16.msra.mxu0 0
    %913 = vmatpush.bf16.msra.mxu0 %v901
    %914 = vmatpush.bf16.msra.mxu0 %v900
    %915 = vmatmul.bf16.gmra.mxu0 %v905
    %v916 = vpop.f32.mrf.mxu0
    %v917 = vadd.f32 0.0, %v916
    %v918 = vpop.f32.mrf.mxu0
    %919 = vdwg.mxu0
    %v920 = vadd.f32 %v868, %v917
    %v921 = vxor.u32 %v920, 2147483648
    %v922 = vmul.f32 %v921, 1.442695
    %v923 = vpow.pop %v922
    %v924 = vadd.f32 %v923, 1.0
    %v925 = vrcp.pop %v924
    %v926 = vmul.f32 %v924, %v925
    %v927 = vsub.f32 1.0, %v926
    %v928 = vmul.f32 %v925, %v927
    %v929 = vadd.f32 %v925, %v928
    %vm930 = vweird.f32 %v924
    %vm931 = vweird.f32 %v925
    %vm932 = vmor %vm930, %vm931
    %v933 = vsel %vm932, %v925, %v929
    %v934 = vand.u32 2147483647, %v924
    %vm935 = vcmp.eq.f32.partialorder %v934, 8.507059e+37
    %v936 = vand.u32 %v924, 2147483648
    %v937 = vor.u32 1.1754944e-38, %v936
    %v938 = vsel %vm935, %v937, %v933
    %v939 = vmul.f32 1.0, %v938
    %v940 = vtanh.pop %v920
    %942 = vrot.lane.b32.xlu0 %v890, 32
    %v943 = vpop.permute.xlu0 %942
    %v945 = vmul.f32 %v939, %v943
    %947 = vrot.lane.b32.xlu0 %v940, 64
    %v948 = vpop.permute.xlu0 %947
    %v950 = vmul.f32 %v939, %v948
    %952 = vrot.lane.b32.xlu0 %v950, 32
    %v953 = vpop.permute.xlu0 %952
    %v955 = vadd.f32 %v945, %v953
    %v956 = vtanh.pop %v955
    %958 = vrot.lane.b32.xlu0 %v956, 64
    %v959 = vpop.permute.xlu0 %958
    %v961 = vmul.f32 %v939, %v959
    %963 = vrot.lane.b32.xlu0 %v961, 32
    %v964 = vpop.permute.xlu0 %963
    %966 = vst.msk [vmem:[#allocation15] sm:$0xff] %vm207, %v964
    %v967 = vpack.c.bf16 %v961, %v961
    %969 = vrot.lane.b32.xlu0 %v967, 32
    %v970 = vpop.permute.xlu0 %969
    %v972 = vsel %vm207, %v970, 0
    %974 = vmatpush.bf16.msra.mxu0 0
    %975 = vmatpush.bf16.msra.mxu0 0
    %976 = vmatpush.bf16.msra.mxu0 0
    %977 = vmatpush.bf16.msra.mxu0 0
    %978 = vmatpush.bf16.msra.mxu0 0
    %979 = vmatpush.bf16.msra.mxu0 0
    %980 = vmatpush.bf16.msra.mxu0 %v901
    %981 = vmatpush.bf16.msra.mxu0 %v900
    %982 = vmatmul.bf16.gmra.mxu0 %v972
    %v983 = vpop.f32.mrf.mxu0
    %v984 = vadd.f32 0.0, %v983
    %v985 = vpop.f32.mrf.mxu0
    %986 = vdwg.mxu0
    %v987 = vadd.f32 %v870, %v984
    %v988 = vxor.u32 %v987, 2147483648
    %v989 = vmul.f32 %v988, 1.442695
    %v990 = vpow.pop %v989
    %v991 = vadd.f32 %v990, 1.0
    %v992 = vrcp.pop %v991
    %v993 = vmul.f32 %v991, %v992
    %v994 = vsub.f32 1.0, %v993
    %v995 = vmul.f32 %v992, %v994
    %v996 = vadd.f32 %v992, %v995
    %vm997 = vweird.f32 %v991
    %vm998 = vweird.f32 %v992
    %vm999 = vmor %vm997, %vm998
    %v1000 = vsel %vm999, %v992, %v996
    %v1001 = vand.u32 2147483647, %v991
    %vm1002 = vcmp.eq.f32.partialorder %v1001, 8.507059e+37
    %v1003 = vand.u32 %v991, 2147483648
    %v1004 = vor.u32 1.1754944e-38, %v1003
    %v1005 = vsel %vm1002, %v1004, %v1000
    %v1006 = vmul.f32 1.0, %v1005
    %v1007 = vtanh.pop %v987
    %v1008 = vmul.f32 %v1006, %v955
    %1010 = vrot.lane.b32.xlu0 %v1007, 64
    %v1011 = vpop.permute.xlu0 %1010
    %v1013 = vmul.f32 %v1006, %v1011
    %1015 = vrot.lane.b32.xlu0 %v1013, 32
    %v1016 = vpop.permute.xlu0 %1015
    %v1018 = vadd.f32 %v1008, %v1016
    %v1019 = vtanh.pop %v1018
    %1021 = vrot.lane.b32.xlu0 %v1019, 64
    %v1022 = vpop.permute.xlu0 %1021
    %v1024 = vmul.f32 %v1006, %v1022
    %1026 = vrot.lane.b32.xlu0 %v1024, 32
    %v1027 = vpop.permute.xlu0 %1026
    %s1029 = scalar_lea.vmem [#allocation15], 8
    %1030 = vst.msk [vmem:[%s1029] sm:$0xff] %vm207, %v1027
    %v1031 = vpack.c.bf16 %v1024, %v1024
    %1033 = vrot.lane.b32.xlu0 %v1031, 32
    %v1034 = vpop.permute.xlu0 %1033
    %v1036 = vsel %vm207, %v1034, 0
    %1038 = vmatpush.bf16.msra.mxu0 0
    %1039 = vmatpush.bf16.msra.mxu0 0
    %1040 = vmatpush.bf16.msra.mxu0 0
    %1041 = vmatpush.bf16.msra.mxu0 0
    %1042 = vmatpush.bf16.msra.mxu0 0
    %1043 = vmatpush.bf16.msra.mxu0 0
    %1044 = vmatpush.bf16.msra.mxu0 %v901
    %1045 = vmatpush.bf16.msra.mxu0 %v900
    %1046 = vmatmul.bf16.gmra.mxu0 %v1036
    %v1047 = vpop.f32.mrf.mxu0
    %v1048 = vadd.f32 0.0, %v1047
    %v1049 = vpop.f32.mrf.mxu0
    %1050 = vdwg.mxu0
    %v1051 = vadd.f32 %v873, %v1048
    %v1052 = vxor.u32 %v1051, 2147483648
    %v1053 = vmul.f32 %v1052, 1.442695
    %v1054 = vpow.pop %v1053
    %v1055 = vadd.f32 %v1054, 1.0
    %v1056 = vrcp.pop %v1055
    %v1057 = vmul.f32 %v1055, %v1056
    %v1058 = vsub.f32 1.0, %v1057
    %v1059 = vmul.f32 %v1056, %v1058
    %v1060 = vadd.f32 %v1056, %v1059
    %vm1061 = vweird.f32 %v1055
    %vm1062 = vweird.f32 %v1056
    %vm1063 = vmor %vm1061, %vm1062
    %v1064 = vsel %vm1063, %v1056, %v1060
    %v1065 = vand.u32 2147483647, %v1055
    %vm1066 = vcmp.eq.f32.partialorder %v1065, 8.507059e+37
    %v1067 = vand.u32 %v1055, 2147483648
    %v1068 = vor.u32 1.1754944e-38, %v1067
    %v1069 = vsel %vm1066, %v1068, %v1064
    %v1070 = vmul.f32 1.0, %v1069
    %v1071 = vtanh.pop %v1051
    %v1072 = vmul.f32 %v1070, %v1018
    %1074 = vrot.lane.b32.xlu0 %v1071, 64
    %v1075 = vpop.permute.xlu0 %1074
    %v1077 = vmul.f32 %v1070, %v1075
    %1079 = vrot.lane.b32.xlu0 %v1077, 32
    %v1080 = vpop.permute.xlu0 %1079
    %v1082 = vadd.f32 %v1072, %v1080
    %v1083 = vtanh.pop %v1082
    %1085 = vrot.lane.b32.xlu0 %v1083, 64
    %v1086 = vpop.permute.xlu0 %1085
    %v1088 = vmul.f32 %v1070, %v1086
    %1090 = vrot.lane.b32.xlu0 %v1088, 32
    %v1091 = vpop.permute.xlu0 %1090
    %s1093 = scalar_lea.vmem [#allocation15], 16
    %1094 = vst.msk [vmem:[%s1093] sm:$0xff] %vm207, %v1091
    %v1095 = vpack.c.bf16 %v1088, %v1088
    %1097 = vrot.lane.b32.xlu0 %v1095, 32
    %v1098 = vpop.permute.xlu0 %1097
    %v1100 = vsel %vm207, %v1098, 0
    %1102 = vmatpush.bf16.msra.mxu0 0
    %1103 = vmatpush.bf16.msra.mxu0 0
    %1104 = vmatpush.bf16.msra.mxu0 0
    %1105 = vmatpush.bf16.msra.mxu0 0
    %1106 = vmatpush.bf16.msra.mxu0 0
    %1107 = vmatpush.bf16.msra.mxu0 0
    %1108 = vmatpush.bf16.msra.mxu0 %v901
    %1109 = vmatpush.bf16.msra.mxu0 %v900
    %1110 = vmatmul.bf16.gmra.mxu0 %v1100
    %v1111 = vpop.f32.mrf.mxu0
    %v1112 = vadd.f32 0.0, %v1111
    %v1113 = vpop.f32.mrf.mxu0
    %1114 = vdwg.mxu0
    %v1115 = vadd.f32 %v875, %v1112
    %v1116 = vxor.u32 %v1115, 2147483648
    %v1117 = vmul.f32 %v1116, 1.442695
    %v1118 = vpow.pop %v1117
    %v1119 = vadd.f32 %v1118, 1.0
    %v1120 = vrcp.pop %v1119
    %v1121 = vmul.f32 %v1119, %v1120
    %v1122 = vsub.f32 1.0, %v1121
    %v1123 = vmul.f32 %v1120, %v1122
    %v1124 = vadd.f32 %v1120, %v1123
    %vm1125 = vweird.f32 %v1119
    %vm1126 = vweird.f32 %v1120
    %vm1127 = vmor %vm1125, %vm1126
    %v1128 = vsel %vm1127, %v1120, %v1124
    %v1129 = vand.u32 2147483647, %v1119
    %vm1130 = vcmp.eq.f32.partialorder %v1129, 8.507059e+37
    %v1131 = vand.u32 %v1119, 2147483648
    %v1132 = vor.u32 1.1754944e-38, %v1131
    %v1133 = vsel %vm1130, %v1132, %v1128
    %v1134 = vmul.f32 1.0, %v1133
    %v1135 = vtanh.pop %v1115
    %v1136 = vmul.f32 %v1134, %v1082
    %1138 = vrot.lane.b32.xlu0 %v1135, 64
    %v1139 = vpop.permute.xlu0 %1138
    %v1141 = vmul.f32 %v1134, %v1139
    %1143 = vrot.lane.b32.xlu0 %v1141, 32
    %v1144 = vpop.permute.xlu0 %1143
    %v1146 = vadd.f32 %v1136, %v1144
    %v1147 = vtanh.pop %v1146
    %1149 = vrot.lane.b32.xlu0 %v1147, 64
    %v1150 = vpop.permute.xlu0 %1149
    %v1152 = vmul.f32 %v1134, %v1150
    %1154 = vrot.lane.b32.xlu0 %v1152, 32
    %v1155 = vpop.permute.xlu0 %1154
    %s1157 = scalar_lea.vmem [#allocation15], 24
    %1158 = vst.msk [vmem:[%s1157] sm:$0xff] %vm207, %v1155
    %v1159 = vpack.c.bf16 %v1152, %v1152
    %1161 = vrot.lane.b32.xlu0 %v1159, 32
    %v1162 = vpop.permute.xlu0 %1161
    %v1164 = vsel %vm207, %v1162, 0
    %1166 = vmatpush.bf16.msra.mxu0 0
    %1167 = vmatpush.bf16.msra.mxu0 0
    %1168 = vmatpush.bf16.msra.mxu0 0
    %1169 = vmatpush.bf16.msra.mxu0 0
    %1170 = vmatpush.bf16.msra.mxu0 0
    %1171 = vmatpush.bf16.msra.mxu0 0
    %1172 = vmatpush.bf16.msra.mxu0 %v901
    %1173 = vmatpush.bf16.msra.mxu0 %v900
    %1174 = vmatmul.bf16.gmra.mxu0 %v1164
    %v1175 = vpop.f32.mrf.mxu0
    %v1176 = vadd.f32 0.0, %v1175
    %v1177 = vpop.f32.mrf.mxu0
    %1178 = vdwg.mxu0
    %v1179 = vadd.f32 %v878, %v1176
    %v1180 = vxor.u32 %v1179, 2147483648
    %v1181 = vmul.f32 %v1180, 1.442695
    %v1182 = vpow.pop %v1181
    %v1183 = vadd.f32 %v1182, 1.0
    %v1184 = vrcp.pop %v1183
    %v1185 = vmul.f32 %v1183, %v1184
    %v1186 = vsub.f32 1.0, %v1185
    %v1187 = vmul.f32 %v1184, %v1186
    %v1188 = vadd.f32 %v1184, %v1187
    %vm1189 = vweird.f32 %v1183
    %vm1190 = vweird.f32 %v1184
    %vm1191 = vmor %vm1189, %vm1190
    %v1192 = vsel %vm1191, %v1184, %v1188
    %v1193 = vand.u32 2147483647, %v1183
    %vm1194 = vcmp.eq.f32.partialorder %v1193, 8.507059e+37
    %v1195 = vand.u32 %v1183, 2147483648
    %v1196 = vor.u32 1.1754944e-38, %v1195
    %v1197 = vsel %vm1194, %v1196, %v1192
    %v1198 = vmul.f32 1.0, %v1197
    %v1199 = vtanh.pop %v1179
    %v1200 = vmul.f32 %v1198, %v1146
    %1202 = vrot.lane.b32.xlu0 %v1199, 64
    %v1203 = vpop.permute.xlu0 %1202
    %v1205 = vmul.f32 %v1198, %v1203
    %1207 = vrot.lane.b32.xlu0 %v1205, 32
    %v1208 = vpop.permute.xlu0 %1207
    %v1210 = vadd.f32 %v1200, %v1208
    %v1211 = vtanh.pop %v1210
    %1213 = vrot.lane.b32.xlu0 %v1211, 64
    %v1214 = vpop.permute.xlu0 %1213
    %v1216 = vmul.f32 %v1198, %v1214
    %1218 = vrot.lane.b32.xlu0 %v1216, 32
    %v1219 = vpop.permute.xlu0 %1218
    %s1221 = scalar_lea.vmem [#allocation15], 32
    %1222 = vst.msk [vmem:[%s1221] sm:$0xff] %vm207, %v1219
    %v1223 = vpack.c.bf16 %v1216, %v1216
    %1225 = vrot.lane.b32.xlu0 %v1223, 32
    %v1226 = vpop.permute.xlu0 %1225
    %v1228 = vsel %vm207, %v1226, 0
    %1230 = vmatpush.bf16.msra.mxu0 0
    %1231 = vmatpush.bf16.msra.mxu0 0
    %1232 = vmatpush.bf16.msra.mxu0 0
    %1233 = vmatpush.bf16.msra.mxu0 0
    %1234 = vmatpush.bf16.msra.mxu0 0
    %1235 = vmatpush.bf16.msra.mxu0 0
    %1236 = vmatpush.bf16.msra.mxu0 %v901
    %1237 = vmatpush.bf16.msra.mxu0 %v900
    %1238 = vmatmul.bf16.gmra.mxu0 %v1228
    %v1239 = vpop.f32.mrf.mxu0
    %v1240 = vadd.f32 0.0, %v1239
    %v1241 = vpop.f32.mrf.mxu0
    %1242 = vdwg.mxu0
    %v1243 = vadd.f32 %v880, %v1240
    %v1244 = vxor.u32 %v1243, 2147483648
    %v1245 = vmul.f32 %v1244, 1.442695
    %v1246 = vpow.pop %v1245
    %v1247 = vadd.f32 %v1246, 1.0
    %v1248 = vrcp.pop %v1247
    %v1249 = vmul.f32 %v1247, %v1248
    %v1250 = vsub.f32 1.0, %v1249
    %v1251 = vmul.f32 %v1248, %v1250
    %v1252 = vadd.f32 %v1248, %v1251
    %vm1253 = vweird.f32 %v1247
    %vm1254 = vweird.f32 %v1248
    %vm1255 = vmor %vm1253, %vm1254
    %v1256 = vsel %vm1255, %v1248, %v1252
    %v1257 = vand.u32 2147483647, %v1247
    %vm1258 = vcmp.eq.f32.partialorder %v1257, 8.507059e+37
    %v1259 = vand.u32 %v1247, 2147483648
    %v1260 = vor.u32 1.1754944e-38, %v1259
    %v1261 = vsel %vm1258, %v1260, %v1256
    %v1262 = vmul.f32 1.0, %v1261
    %v1263 = vtanh.pop %v1243
    %v1264 = vmul.f32 %v1262, %v1210
    %1266 = vrot.lane.b32.xlu0 %v1263, 64
    %v1267 = vpop.permute.xlu0 %1266
    %v1269 = vmul.f32 %v1262, %v1267
    %1271 = vrot.lane.b32.xlu0 %v1269, 32
    %v1272 = vpop.permute.xlu0 %1271
    %v1274 = vadd.f32 %v1264, %v1272
    %v1275 = vtanh.pop %v1274
    %1277 = vrot.lane.b32.xlu0 %v1275, 64
    %v1278 = vpop.permute.xlu0 %1277
    %v1280 = vmul.f32 %v1262, %v1278
    %1282 = vrot.lane.b32.xlu0 %v1280, 32
    %v1283 = vpop.permute.xlu0 %1282
    %s1285 = scalar_lea.vmem [#allocation15], 40
    %1286 = vst.msk [vmem:[%s1285] sm:$0xff] %vm207, %v1283
    %v1287 = vpack.c.bf16 %v1280, %v1280
    %1289 = vrot.lane.b32.xlu0 %v1287, 32
    %v1290 = vpop.permute.xlu0 %1289
    %v1292 = vsel %vm207, %v1290, 0
    %1294 = vmatpush.bf16.msra.mxu0 0
    %1295 = vmatpush.bf16.msra.mxu0 0
    %1296 = vmatpush.bf16.msra.mxu0 0
    %1297 = vmatpush.bf16.msra.mxu0 0
    %1298 = vmatpush.bf16.msra.mxu0 0
    %1299 = vmatpush.bf16.msra.mxu0 0
    %1300 = vmatpush.bf16.msra.mxu0 %v901
    %1301 = vmatpush.bf16.msra.mxu0 %v900
    %1302 = vmatmul.bf16.gmra.mxu0 %v1292
    %v1303 = vpop.f32.mrf.mxu0
    %v1304 = vadd.f32 0.0, %v1303
    %v1305 = vpop.f32.mrf.mxu0
    %1306 = vdwg.mxu0
    %v1307 = vadd.f32 %v883, %v1304
    %v1308 = vxor.u32 %v1307, 2147483648
    %v1309 = vmul.f32 %v1308, 1.442695
    %v1310 = vpow.pop %v1309
    %v1311 = vadd.f32 %v1310, 1.0
    %v1312 = vrcp.pop %v1311
    %v1313 = vmul.f32 %v1311, %v1312
    %v1314 = vsub.f32 1.0, %v1313
    %v1315 = vmul.f32 %v1312, %v1314
    %v1316 = vadd.f32 %v1312, %v1315
    %vm1317 = vweird.f32 %v1311
    %vm1318 = vweird.f32 %v1312
    %vm1319 = vmor %vm1317, %vm1318
    %v1320 = vsel %vm1319, %v1312, %v1316
    %v1321 = vand.u32 2147483647, %v1311
    %vm1322 = vcmp.eq.f32.partialorder %v1321, 8.507059e+37
    %v1323 = vand.u32 %v1311, 2147483648
    %v1324 = vor.u32 1.1754944e-38, %v1323
    %v1325 = vsel %vm1322, %v1324, %v1320
    %v1326 = vmul.f32 1.0, %v1325
    %v1327 = vtanh.pop %v1307
    %v1328 = vmul.f32 %v1326, %v1274
    %1330 = vrot.lane.b32.xlu0 %v1327, 64
    %v1331 = vpop.permute.xlu0 %1330
    %v1333 = vmul.f32 %v1326, %v1331
    %1335 = vrot.lane.b32.xlu0 %v1333, 32
    %v1336 = vpop.permute.xlu0 %1335
    %v1338 = vadd.f32 %v1328, %v1336
    %v1339 = vtanh.pop %v1338
    %1341 = vrot.lane.b32.xlu0 %v1339, 64
    %v1342 = vpop.permute.xlu0 %1341
    %v1344 = vmul.f32 %v1326, %v1342
    %1346 = vrot.lane.b32.xlu0 %v1344, 32
    %v1347 = vpop.permute.xlu0 %1346
    %s1349 = scalar_lea.vmem [#allocation15], 48
    %1350 = vst.msk [vmem:[%s1349] sm:$0xff] %vm207, %v1347
    %v1351 = vpack.c.bf16 %v1344, %v1344
    %1353 = vrot.lane.b32.xlu0 %v1351, 32
    %v1354 = vpop.permute.xlu0 %1353
    %v1356 = vsel %vm207, %v1354, 0
    %1358 = vmatpush.bf16.msra.mxu0 0
    %1359 = vmatpush.bf16.msra.mxu0 0
    %1360 = vmatpush.bf16.msra.mxu0 0
    %1361 = vmatpush.bf16.msra.mxu0 0
    %1362 = vmatpush.bf16.msra.mxu0 0
    %1363 = vmatpush.bf16.msra.mxu0 0
    %1364 = vmatpush.bf16.msra.mxu0 %v901
    %1365 = vmatpush.bf16.msra.mxu0 %v900
    %1366 = vmatmul.bf16.gmra.mxu0 %v1356
    %v1367 = vpop.f32.mrf.mxu0
    %v1368 = vadd.f32 0.0, %v1367
    %v1369 = vpop.f32.mrf.mxu0
    %1370 = vdwg.mxu0
    %v1371 = vadd.f32 %v885, %v1368
    %v1372 = vxor.u32 %v1371, 2147483648
    %v1373 = vmul.f32 %v1372, 1.442695
    %v1374 = vpow.pop %v1373
    %v1375 = vadd.f32 %v1374, 1.0
    %v1376 = vrcp.pop %v1375
    %v1377 = vmul.f32 %v1375, %v1376
    %v1378 = vsub.f32 1.0, %v1377
    %v1379 = vmul.f32 %v1376, %v1378
    %v1380 = vadd.f32 %v1376, %v1379
    %vm1381 = vweird.f32 %v1375
    %vm1382 = vweird.f32 %v1376
    %vm1383 = vmor %vm1381, %vm1382
    %v1384 = vsel %vm1383, %v1376, %v1380
    %v1385 = vand.u32 2147483647, %v1375
    %vm1386 = vcmp.eq.f32.partialorder %v1385, 8.507059e+37
    %v1387 = vand.u32 %v1375, 2147483648
    %v1388 = vor.u32 1.1754944e-38, %v1387
    %v1389 = vsel %vm1386, %v1388, %v1384
    %v1390 = vmul.f32 1.0, %v1389
    %v1391 = vtanh.pop %v1371
    %v1392 = vmul.f32 %v1390, %v1338
    %1394 = vrot.lane.b32.xlu0 %v1391, 64
    %v1395 = vpop.permute.xlu0 %1394
    %v1397 = vmul.f32 %v1390, %v1395
    %1399 = vrot.lane.b32.xlu0 %v1397, 32
    %v1400 = vpop.permute.xlu0 %1399
    %v1402 = vadd.f32 %v1392, %v1400
    %v1403 = vtanh.pop %v1402
    %1405 = vrot.lane.b32.xlu0 %v1403, 64
    %v1406 = vpop.permute.xlu0 %1405
    %v1408 = vmul.f32 %v1390, %v1406
    %1410 = vrot.lane.b32.xlu0 %v1408, 32
    %v1411 = vpop.permute.xlu0 %1410
    %s1413 = scalar_lea.vmem [#allocation15], 56
    %1414 = vst.msk [vmem:[%s1413] sm:$0xff] %vm207, %v1411
    %s1415 = scalar_lea.vmem [#allocation16], 8
    %1416 = vst.msk [vmem:[%s1415] sm:$0xff] %vm207, %v1411
    %1418 = vrot.lane.b32.xlu0 %v1402, 96
    %v1419 = vpop.permute.xlu0 %1418
    %s1421 = scalar_lea.vmem [#allocation18], 8
    %1422 = vst.msk [vmem:[%s1421] sm:$0xff] %vm207, %v1419
    // Predicated region
    $region66: #{tpu_custom_call.1} parent=1 // pred_check
      _
    $region67: #{tpu_custom_call.1} parent=1 // pred_check_branch
      %1424 = sbr.rel (0) target = $region69
    $region68: #{tpu_custom_call.1} parent=1 // pred_region
      %1426 = vsyncadd [#allocation5], 0
      %s1427 = sshll.u32 [#allocation15], 4
      %s1428 = int_to_ptr.vmem [resolvable:$true] %s1427
      %s1429 = sshll.u32 %s9, 4
      %s1430 = int_to_ptr.hbm [resolvable:$true] %s1429
      %1435 = dma.vmem_to_hbm [thread:$0]  %s1428, 1024, %s1430, [#allocation5], 128, 128, 8
    $region69: #{tpu_custom_call.1} parent=1 // pred_fallthru
      _
    // Predicated region
    $region70: #{tpu_custom_call.1} parent=1 // pred_check
      _
    $region71: #{tpu_custom_call.1} parent=1 // pred_check_branch
      %1437 = sbr.rel (0) target = $region73
    $region72: #{tpu_custom_call.1} parent=1 // pred_region
      %1439 = vsyncadd [#allocation17], 0
      %s1440 = sshll.u32 [#allocation16], 4
      %s1441 = int_to_ptr.vmem [resolvable:$true] %s1440
      %s1442 = sshll.u32 %s10, 4
      %s1443 = int_to_ptr.hbm [resolvable:$true] %s1442
      %1448 = dma.vmem_to_hbm [thread:$0]  %s1441, 256, %s1443, [#allocation17], 128, 128, 8
    $region73: #{tpu_custom_call.1} parent=1 // pred_fallthru
      _
    // Predicated region
    $region74: #{tpu_custom_call.1} parent=1 // pred_check
      _
    $region75: #{tpu_custom_call.1} parent=1 // pred_check_branch
      %1450 = sbr.rel (0) target = $region77
    $region76: #{tpu_custom_call.1} parent=1 // pred_region
      %1452 = vsyncadd [#allocation17], 0
      %s1453 = sshll.u32 [#allocation18], 4
      %s1454 = int_to_ptr.vmem [resolvable:$true] %s1453
      %s1455 = sshll.u32 %s11, 4
      %s1456 = int_to_ptr.hbm [resolvable:$true] %s1455
      %1461 = dma.vmem_to_hbm [thread:$0]  %s1454, 256, %s1456, [#allocation17], 128, 128, 8
    $region77: #{tpu_custom_call.1} parent=1 // pred_fallthru
      _
    // Predicated region
    $region78: #{tpu_custom_call.1} parent=1 // pred_check
      _
    $region79: #{tpu_custom_call.1} parent=1 // pred_check_branch
      %1463 = sbr.rel (0) target = $region81
    $region80: #{tpu_custom_call.1} parent=1 // pred_region
      %1465 = dma.done [#allocation5], 1024
    $region81: #{tpu_custom_call.1} parent=1 // pred_fallthru
      _
    // Predicated region
    $region82: #{tpu_custom_call.1} parent=1 // pred_check
      _
    $region83: #{tpu_custom_call.1} parent=1 // pred_check_branch
      %1467 = sbr.rel (0) target = $region85
    $region84: #{tpu_custom_call.1} parent=1 // pred_region
      %1469 = dma.done [#allocation17], 256
    $region85: #{tpu_custom_call.1} parent=1 // pred_fallthru
      _
    // Predicated region
    $region86: #{tpu_custom_call.1} parent=1 // pred_check
      _
    $region87: #{tpu_custom_call.1} parent=1 // pred_check_branch
      %1471 = sbr.rel (0) target = $region89
    $region88: #{tpu_custom_call.1} parent=1 // pred_region
      %1473 = dma.done [#allocation17], 256
    $region89: #{tpu_custom_call.1} parent=1 // pred_fallthru
      _
    %1474 = vsyncpa [#allocation4], 1
    %1475 = vsyncpa [#allocation7], 1
    %1476 = vsyncpa [#allocation10], 1
    %1477 = vsyncpa [#allocation13], 1
    %1478 = vsyncpa [#allocation5], 1
    %1479 = vsyncpa [#allocation17], 1

</llo_original>
